<compile_context>
chip_gen: v5e
topology: v5e:2x2
jax: 0.10.0
libtpu: 0.0.40
codegen_flags: <defaults>
</compile_context>

<pallas_src>
import math
import functools

import jax
import jax.numpy as jnp
from jax.experimental import pallas as pl
from jax.experimental.pallas import tpu as pltpu


# ----------------------------- kernel helpers -----------------------------

def _rmsnorm(x, w, eps=1e-5):
    var = jnp.mean(x * x, axis=-1, keepdims=True)
    return x * jax.lax.rsqrt(var + eps) * w


def _rope(xh, cos, sin, head_dim):
    # rotate_half(x) = concat(-x[:, hd/2:], x[:, :hd/2])
    half = head_dim // 2
    rot = jnp.concatenate([-xh[:, half:], xh[:, :half]], axis=-1)
    return xh * cos + rot * sin


# -------------------------------- kernel ----------------------------------

def mistral_layer_kernel(num_heads, head_dim, num_kv_heads, batch, seq,
                         x_ref, cos_ref, sin_ref, w1_ref, w2_ref,
                         wqkv_ref, wo_ref, wgu_ref, wd_ref,
                         out_ref,
                         q_rot_ref, k_rot_ref, attn_ref):
    hd = head_dim
    n_rep = num_heads // num_kv_heads
    q_width = num_heads * hd
    kv_width = num_kv_heads * hd
    inter = wgu_ref.shape[1] // 2

    x = x_ref[...]                     # (B*S, H)
    cos = cos_ref[...]                 # (B*S, hd)
    sin = sin_ref[...]                 # (B*S, hd)

    # ---- attention block ----
    xn1 = _rmsnorm(x, w1_ref[...])
    qkv = jnp.dot(xn1, wqkv_ref[...], preferred_element_type=jnp.float32)
    q = qkv[:, :q_width]
    k = qkv[:, q_width:q_width + kv_width]
    v = qkv[:, q_width + kv_width:]

    # RoPE: once per query head, once per KV head (hoisted out of the
    # attention loop); results written to VMEM scratch to bound live ranges.
    for h in range(num_heads):
        q_rot_ref[:, h * hd:(h + 1) * hd] = _rope(
            q[:, h * hd:(h + 1) * hd], cos, sin, hd)
    for g in range(num_kv_heads):
        k_rot_ref[:, g * hd:(g + 1) * hd] = _rope(
            k[:, g * hd:(g + 1) * hd], cos, sin, hd)

    # Causal additive mask generated in-kernel (no [B,S,S] HBM traffic).
    row = jax.lax.broadcasted_iota(jnp.int32, (seq, seq), 0)
    col = jax.lax.broadcasted_iota(jnp.int32, (seq, seq), 1)
    bias = jnp.where(row >= col, 0.0, -1e9).astype(jnp.float32)

    scale = 1.0 / math.sqrt(hd)
    for b in range(batch):
        r0 = b * seq
        for h in range(num_heads):
            g = h // n_rep
            qh = q_rot_ref[r0:r0 + seq, h * hd:(h + 1) * hd]
            kh = k_rot_ref[r0:r0 + seq, g * hd:(g + 1) * hd]
            vh = v[r0:r0 + seq, g * hd:(g + 1) * hd]

            s = jax.lax.dot_general(
                qh, kh, (((1,), (1,)), ((), ())),
                preferred_element_type=jnp.float32)
            s = s * scale + bias
            s = s - jnp.max(s, axis=-1, keepdims=True)
            p = jnp.exp(s)
            inv = pl.reciprocal(jnp.sum(p, axis=-1, keepdims=True), approx=True)
            attn_ref[r0:r0 + seq, h * hd:(h + 1) * hd] = jnp.dot(
                p * inv, vh, preferred_element_type=jnp.float32)

    o_final = jnp.dot(attn_ref[...], wo_ref[...],
                      preferred_element_type=jnp.float32)
    x_med = x + o_final

    # ---- MLP block (SwiGLU) ----
    xn2 = _rmsnorm(x_med, w2_ref[...])
    gu = jnp.dot(xn2, wgu_ref[...], preferred_element_type=jnp.float32)
    gate = gu[:, :inter]
    up = gu[:, inter:]
    hadamard = up * (gate * jax.nn.sigmoid(gate))
    down = jnp.dot(hadamard, wd_ref[...], preferred_element_type=jnp.float32)

    out_ref[...] = x_med + down


# ------------------------------- wrapper -----------------------------------

def fused_mistral_layer(x, cos, sin, p, *, num_heads, head_dim, num_kv_heads):
    B, S, H = x.shape
    x2d = x.reshape(B * S, H)
    cos_bs = jnp.tile(cos, (B, 1))
    sin_bs = jnp.tile(sin, (B, 1))

    # Fold LoRA into the base weights (forward-only, mathematically exact):
    #   x @ w + (x @ a) @ b == x @ (w + a @ b)
    def fold(w, a, b):
        return w + a @ b

    wq = fold(p["wq"], p["aq"], p["bqL"])
    wk = fold(p["wk"], p["ak"], p["bkL"])
    wv = fold(p["wv"], p["av"], p["bvL"])
    wo = fold(p["wo"], p["ao"], p["boL"])
    wg = fold(p["wg"], p["ag"], p["bgL"])
    wu = fold(p["wu"], p["au"], p["buL"])
    wd = fold(p["wd"], p["ad"], p["bdL"])

    # Fuse q/k/v and gate/up into single wide matmuls.
    wqkv = jnp.concatenate([wq, wk, wv], axis=1)    # (H, (nh + 2*nkv)*hd)
    wgu = jnp.concatenate([wg, wu], axis=1)         # (H, 2*inter)

    operands = (x2d, cos_bs, sin_bs, p["w1"], p["w2"], wqkv, wo, wgu, wd)

    kernel = functools.partial(mistral_layer_kernel, num_heads, head_dim,
                               num_kv_heads, B, S)

    vmem_spec = pl.BlockSpec(memory_space=pltpu.MemorySpace.VMEM)

    out2d = pl.pallas_call(
        kernel,
        out_shape=jax.ShapeDtypeStruct((B * S, H), x.dtype),
        in_specs=[vmem_spec] * len(operands),
        out_specs=vmem_spec,
        scratch_shapes=[
            pltpu.VMEM((B * S, num_heads * head_dim), jnp.float32),     # q RoPE
            pltpu.VMEM((B * S, num_kv_heads * head_dim), jnp.float32),  # k RoPE
            pltpu.VMEM((B * S, num_heads * head_dim), jnp.float32),     # attn out
        ],
        input_output_aliases={0: 0},
    )(*operands)

    return out2d.reshape(B, S, H)


# ---------------------------- pure-JAX reference ----------------------------

def reference_layer(x, mask, cos, sin, p, *, num_heads, head_dim,
                    num_kv_heads):
    def rms(t, w):
        return t * jax.lax.rsqrt(jnp.mean(t * t, -1, keepdims=True) + 1e-5) * w

    def lin(t, w, a, lb):                         # base + unfolded LoRA
        return t @ w + (t @ a) @ lb

    B, S, H = x.shape
    xn1 = rms(x, p["w1"])
    q = lin(xn1, p["wq"], p["aq"], p["bqL"])
    k = lin(xn1, p["wk"], p["ak"], p["bkL"])
    v = lin(xn1, p["wv"], p["av"], p["bvL"])

    q = q.reshape(B, S, num_heads, head_dim).transpose(0, 2, 1, 3)
    k = k.reshape(B, S, num_kv_heads, head_dim).transpose(0, 2, 1, 3)
    v = v.reshape(B, S, num_kv_heads, head_dim).transpose(0, 2, 1, 3)

    def rope(t):
        rot = jnp.concatenate([-t[..., head_dim // 2:], t[..., :head_dim // 2]], -1)
        return t * cos[None, None] + rot * sin[None, None]

    q, k = rope(q), rope(k)
    n_rep = num_heads // num_kv_heads
    k = jnp.repeat(k, n_rep, axis=1)
    v = jnp.repeat(v, n_rep, axis=1)

    s = jnp.einsum("bhqd,bhkd->bhqk", q, k) / math.sqrt(head_dim) + mask[:, None]
    a = jax.nn.softmax(s, axis=-1)
    o = jnp.einsum("bhqk,bhkd->bhqd", a, v)
    o = o.transpose(0, 2, 1, 3).reshape(B, S, num_heads * head_dim)

    o_final = lin(o, p["wo"], p["ao"], p["boL"])
    x_med = x + o_final
    xn2 = rms(x_med, p["w2"])
    gate = lin(xn2, p["wg"], p["ag"], p["bgL"])
    up = lin(xn2, p["wu"], p["au"], p["buL"])
    had = up * (gate * jax.nn.sigmoid(gate))
    down = lin(had, p["wd"], p["ad"], p["bdL"])
    return x_med + down


# --------------------------------- main -------------------------------------

if __name__ == "__main__":
    B, S, H = 2, 8, 256
    num_heads, num_kv_heads, head_dim = 2, 1, 128
    inter = 512
    rank = 8
    q_out = num_heads * head_dim          # 256
    kv_out = num_kv_heads * head_dim      # 128

    key = jax.random.PRNGKey(0)
    keys = iter(jax.random.split(key, 64))

    def w_init(shape, fan_in):
        return (jax.random.normal(next(keys), shape, jnp.float32)
                / math.sqrt(fan_in))

    params = {
        "w1": jnp.ones((1, H), jnp.float32),
        "w2": jnp.ones((1, H), jnp.float32),
        # q / k / v projections (weights pre-transposed to [in, out])
        "wq": w_init((H, q_out), H), "aq": w_init((H, rank), H),
        "bqL": 0.01 * w_init((rank, q_out), rank),
        "wk": w_init((H, kv_out), H), "ak": w_init((H, rank), H),
        "bkL": 0.01 * w_init((rank, kv_out), rank),
        "wv": w_init((H, kv_out), H), "av": w_init((H, rank), H),
        "bvL": 0.01 * w_init((rank, kv_out), rank),
        # output projection
        "wo": w_init((q_out, H), q_out), "ao": w_init((q_out, rank), q_out),
        "boL": 0.01 * w_init((rank, H), rank),
        # MLP
        "wg": w_init((H, inter), H), "ag": w_init((H, rank), H),
        "bgL": 0.01 * w_init((rank, inter), rank),
        "wu": w_init((H, inter), H), "au": w_init((H, rank), H),
        "buL": 0.01 * w_init((rank, inter), rank),
        "wd": w_init((inter, H), inter), "ad": w_init((inter, rank), inter),
        "bdL": 0.01 * w_init((rank, H), rank),
    }

    x = jax.random.normal(next(keys), (B, S, H), jnp.float32)

    # RoPE tables
    inv_freq = 1.0 / (10000.0 ** (jnp.arange(0, head_dim, 2, jnp.float32) / head_dim))
    pos = jnp.arange(S, dtype=jnp.float32)
    freqs = pos[:, None] * inv_freq[None, :]          # (S, head_dim/2)
    emb = jnp.concatenate([freqs, freqs], axis=-1)    # (S, head_dim)
    cos, sin = jnp.cos(emb), jnp.sin(emb)

    # Additive causal mask (reference only; kernel generates it in-VMEM).
    causal = jnp.where(jnp.arange(S)[:, None] >= jnp.arange(S)[None, :],
                       0.0, -1e9).astype(jnp.float32)
    mask = jnp.broadcast_to(causal, (B, S, S))

    ref = reference_layer(x, mask, cos, sin, params,
                          num_heads=num_heads, head_dim=head_dim,
                          num_kv_heads=num_kv_heads)
    ref = jax.block_until_ready(ref)

    out = fused_mistral_layer(x, cos, sin, params,
                              num_heads=num_heads, head_dim=head_dim,
                              num_kv_heads=num_kv_heads)
    out = jax.block_until_ready(out)

    assert out.shape == (B, S, H)
    # Default (bf16-pass) MXU precision in both kernel and reference, folded
    # vs. unfolded LoRA, and the approx softmax reciprocal all contribute
    # small numeric differences -> use a scale-aware tolerance.
    max_err = float(jnp.max(jnp.abs(out - ref)))
    ref_scale = float(jnp.max(jnp.abs(ref)))
    tol = 1e-2 + 2e-2 * ref_scale
    assert max_err < tol, f"max abs error {max_err} exceeds tol {tol}"
    print("KERNEL_OK")
</pallas_src>

<mosaic_0001>
module attributes {stable_mosaic.version = 11 : i64} {
  func.func @mistral_layer_kernel(%arg0: memref<16x256xf32, #tpu.memory_space<vmem>>, %arg1: memref<16x128xf32, #tpu.memory_space<vmem>>, %arg2: memref<16x128xf32, #tpu.memory_space<vmem>>, %arg3: memref<1x256xf32, #tpu.memory_space<vmem>>, %arg4: memref<1x256xf32, #tpu.memory_space<vmem>>, %arg5: memref<256x512xf32, #tpu.memory_space<vmem>>, %arg6: memref<256x256xf32, #tpu.memory_space<vmem>>, %arg7: memref<256x1024xf32, #tpu.memory_space<vmem>>, %arg8: memref<512x256xf32, #tpu.memory_space<vmem>>, %arg9: memref<16x256xf32, #tpu.memory_space<vmem>>, %arg10: memref<16x256xf32, #tpu.memory_space<vmem>>, %arg11: memref<16x128xf32, #tpu.memory_space<vmem>>, %arg12: memref<16x256xf32, #tpu.memory_space<vmem>>) attributes {dimension_semantics = [], scalar_prefetch = 0 : i64, scratch_operands = 3 : i64, tpu.core_type = #tpu.core_type<tc>} {
    %c0 = arith.constant 0 : index
    %c0_0 = arith.constant 0 : index
    %0 = vector.load %arg0[%c0, %c0_0] : memref<16x256xf32, #tpu.memory_space<vmem>>, vector<16x256xf32>
    %c0_1 = arith.constant 0 : index
    %c0_2 = arith.constant 0 : index
    %1 = vector.load %arg1[%c0_1, %c0_2] : memref<16x128xf32, #tpu.memory_space<vmem>>, vector<16x128xf32>
    %c0_3 = arith.constant 0 : index
    %c0_4 = arith.constant 0 : index
    %2 = vector.load %arg2[%c0_3, %c0_4] : memref<16x128xf32, #tpu.memory_space<vmem>>, vector<16x128xf32>
    %c0_5 = arith.constant 0 : index
    %c0_6 = arith.constant 0 : index
    %3 = vector.load %arg3[%c0_5, %c0_6] : memref<1x256xf32, #tpu.memory_space<vmem>>, vector<1x256xf32>
    %4 = arith.mulf %0, %0 : vector<16x256xf32>
    %cst = arith.constant dense<0.000000e+00> : vector<16xf32>
    %5 = vector.multi_reduction <add>, %4, %cst [1] : vector<16x256xf32> to vector<16xf32>
    %6 = vector.shape_cast %5 : vector<16xf32> to vector<16x1xf32>
    %cst_7 = arith.constant 2.560000e+02 : f32
    %7 = vector.broadcast %cst_7 : f32 to vector<16x1xf32>
    %8 = arith.divf %6, %7 : vector<16x1xf32>
    %cst_8 = arith.constant 9.99999974E-6 : f32
    %9 = vector.broadcast %cst_8 : f32 to vector<16x1xf32>
    %10 = arith.addf %8, %9 : vector<16x1xf32>
    %11 = math.rsqrt %10 : vector<16x1xf32>
    %12 = vector.broadcast %11 : vector<16x1xf32> to vector<16x256xf32>
    %13 = arith.mulf %0, %12 : vector<16x256xf32>
    %14 = vector.broadcast %3 : vector<1x256xf32> to vector<16x256xf32>
    %15 = arith.mulf %13, %14 : vector<16x256xf32>
    %c0_9 = arith.constant 0 : index
    %c0_10 = arith.constant 0 : index
    %16 = vector.load %arg5[%c0_9, %c0_10] : memref<256x512xf32, #tpu.memory_space<vmem>>, vector<256x512xf32>
    %cst_11 = arith.constant dense<0.000000e+00> : vector<16x512xf32>
    %17 = tpu.matmul %15, %16, %cst_11 {dimension_numbers = #tpu.dot_dimension_numbers<[1], [0], [0], [1], [0, 0, 1, 1], [], []>} : vector<16x256xf32>, vector<256x512xf32>, vector<16x512xf32> -> vector<16x512xf32>
    %18 = vector.extract_strided_slice %17 {offsets = [0, 0], sizes = [16, 256], strides = [1, 1]} : vector<16x512xf32> to vector<16x256xf32>
    %19 = vector.extract_strided_slice %17 {offsets = [0, 256], sizes = [16, 128], strides = [1, 1]} : vector<16x512xf32> to vector<16x128xf32>
    %20 = vector.extract_strided_slice %17 {offsets = [0, 384], sizes = [16, 128], strides = [1, 1]} : vector<16x512xf32> to vector<16x128xf32>
    %21 = vector.extract_strided_slice %18 {offsets = [0, 0], sizes = [16, 128], strides = [1, 1]} : vector<16x256xf32> to vector<16x128xf32>
    %22 = vector.extract_strided_slice %21 {offsets = [0, 64], sizes = [16, 64], strides = [1, 1]} : vector<16x128xf32> to vector<16x64xf32>
    %cst_12 = arith.constant 0.000000e+00 : f32
    %23 = vector.broadcast %cst_12 : f32 to vector<16x64xf32>
    %24 = arith.subf %23, %22 : vector<16x64xf32>
    %25 = vector.extract_strided_slice %21 {offsets = [0, 0], sizes = [16, 64], strides = [1, 1]} : vector<16x128xf32> to vector<16x64xf32>
    %26 = tpu.concatenate %24, %25 in 1 : vector<16x64xf32>, vector<16x64xf32> -> vector<16x128xf32>
    %27 = arith.mulf %21, %1 : vector<16x128xf32>
    %28 = arith.mulf %26, %2 : vector<16x128xf32>
    %29 = arith.addf %27, %28 : vector<16x128xf32>
    %c0_13 = arith.constant 0 : index
    %c0_14 = arith.constant 0 : index
    %30 = vector.load %arg10[%c0_13, %c0_14] : memref<16x256xf32, #tpu.memory_space<vmem>>, vector<16x128xf32>
    tpu.vector_store %arg10[%c0_13, %c0_14], %29 {strides = array<i32>} : memref<16x256xf32, #tpu.memory_space<vmem>>, vector<16x128xf32>,
    %31 = vector.extract_strided_slice %18 {offsets = [0, 128], sizes = [16, 128], strides = [1, 1]} : vector<16x256xf32> to vector<16x128xf32>
    %32 = vector.extract_strided_slice %31 {offsets = [0, 64], sizes = [16, 64], strides = [1, 1]} : vector<16x128xf32> to vector<16x64xf32>
    %cst_15 = arith.constant 0.000000e+00 : f32
    %33 = vector.broadcast %cst_15 : f32 to vector<16x64xf32>
    %34 = arith.subf %33, %32 : vector<16x64xf32>
    %35 = vector.extract_strided_slice %31 {offsets = [0, 0], sizes = [16, 64], strides = [1, 1]} : vector<16x128xf32> to vector<16x64xf32>
    %36 = tpu.concatenate %34, %35 in 1 : vector<16x64xf32>, vector<16x64xf32> -> vector<16x128xf32>
    %37 = arith.mulf %31, %1 : vector<16x128xf32>
    %38 = arith.mulf %36, %2 : vector<16x128xf32>
    %39 = arith.addf %37, %38 : vector<16x128xf32>
    %c0_16 = arith.constant 0 : index
    %c128 = arith.constant 128 : index
    %40 = vector.load %arg10[%c0_16, %c128] : memref<16x256xf32, #tpu.memory_space<vmem>>, vector<16x128xf32>
    tpu.vector_store %arg10[%c0_16, %c128], %39 {strides = array<i32>} : memref<16x256xf32, #tpu.memory_space<vmem>>, vector<16x128xf32>,
    %41 = vector.extract_strided_slice %19 {offsets = [0, 64], sizes = [16, 64], strides = [1, 1]} : vector<16x128xf32> to vector<16x64xf32>
    %cst_17 = arith.constant 0.000000e+00 : f32
    %42 = vector.broadcast %cst_17 : f32 to vector<16x64xf32>
    %43 = arith.subf %42, %41 : vector<16x64xf32>
    %44 = vector.extract_strided_slice %19 {offsets = [0, 0], sizes = [16, 64], strides = [1, 1]} : vector<16x128xf32> to vector<16x64xf32>
    %45 = tpu.concatenate %43, %44 in 1 : vector<16x64xf32>, vector<16x64xf32> -> vector<16x128xf32>
    %46 = arith.mulf %19, %1 : vector<16x128xf32>
    %47 = arith.mulf %45, %2 : vector<16x128xf32>
    %48 = arith.addf %46, %47 : vector<16x128xf32>
    %c0_18 = arith.constant 0 : index
    %c0_19 = arith.constant 0 : index
    %49 = vector.load %arg11[%c0_18, %c0_19] : memref<16x128xf32, #tpu.memory_space<vmem>>, vector<16x128xf32>
    tpu.vector_store %arg11[%c0_18, %c0_19], %48 {strides = array<i32>} : memref<16x128xf32, #tpu.memory_space<vmem>>, vector<16x128xf32>,
    %50 = tpu.iota {dimensions = array<i32: 0>} : vector<8x8xi32>
    %51 = tpu.iota {dimensions = array<i32: 1>} : vector<8x8xi32>
    %52 = arith.cmpi sge, %50, %51 : vector<8x8xi32>
    %cst_20 = arith.constant 0.000000e+00 : f32
    %cst_21 = arith.constant -1.000000e+09 : f32
    %53 = vector.broadcast %cst_20 : f32 to vector<8x8xf32>
    %54 = vector.broadcast %cst_21 : f32 to vector<8x8xf32>
    %55 = arith.select %52, %53, %54 : vector<8x8xi1>, vector<8x8xf32>
    %c0_22 = arith.constant 0 : index
    %c0_23 = arith.constant 0 : index
    %56 = vector.load %arg10[%c0_22, %c0_23] : memref<16x256xf32, #tpu.memory_space<vmem>>, vector<8x128xf32>
    %c0_24 = arith.constant 0 : index
    %c0_25 = arith.constant 0 : index
    %57 = vector.load %arg11[%c0_24, %c0_25] : memref<16x128xf32, #tpu.memory_space<vmem>>, vector<8x128xf32>
    %58 = vector.extract_strided_slice %20 {offsets = [0, 0], sizes = [8, 128], strides = [1, 1]} : vector<16x128xf32> to vector<8x128xf32>
    %cst_26 = arith.constant dense<0.000000e+00> : vector<8x8xf32>
    %59 = tpu.matmul %56, %57, %cst_26 {dimension_numbers = #tpu.dot_dimension_numbers<[1], [1], [0], [0], [0, 0, 1, 0], [], []>} : vector<8x128xf32>, vector<8x128xf32>, vector<8x8xf32> -> vector<8x8xf32>
    %cst_27 = arith.constant 0.0883883461 : f32
    %60 = vector.broadcast %cst_27 : f32 to vector<8x8xf32>
    %61 = arith.mulf %59, %60 : vector<8x8xf32>
    %62 = arith.addf %61, %55 : vector<8x8xf32>
    %cst_28 = arith.constant dense<0xFF800000> : vector<8xf32>
    %63 = vector.multi_reduction <maximumf>, %62, %cst_28 [1] : vector<8x8xf32> to vector<8xf32>
    %64 = vector.shape_cast %63 : vector<8xf32> to vector<8x1xf32>
    %65 = vector.broadcast %64 : vector<8x1xf32> to vector<8x8xf32>
    %66 = arith.subf %62, %65 : vector<8x8xf32>
    %67 = math.exp %66 : vector<8x8xf32>
    %cst_29 = arith.constant dense<0.000000e+00> : vector<8xf32>
    %68 = vector.multi_reduction <add>, %67, %cst_29 [1] : vector<8x8xf32> to vector<8xf32>
    %69 = vector.shape_cast %68 : vector<8xf32> to vector<8x1xf32>
    %70 = tpu.reciprocal %69 {approx = true} : vector<8x1xf32> -> vector<8x1xf32>
    %71 = vector.broadcast %70 : vector<8x1xf32> to vector<8x8xf32>
    %72 = arith.mulf %67, %71 : vector<8x8xf32>
    %cst_30 = arith.constant dense<0.000000e+00> : vector<8x128xf32>
    %73 = tpu.matmul %72, %58, %cst_30 {dimension_numbers = #tpu.dot_dimension_numbers<[1], [0], [0], [1], [0, 0, 1, 1], [], []>} : vector<8x8xf32>, vector<8x128xf32>, vector<8x128xf32> -> vector<8x128xf32>
    %c0_31 = arith.constant 0 : index
    %c0_32 = arith.constant 0 : index
    %74 = vector.load %arg12[%c0_31, %c0_32] : memref<16x256xf32, #tpu.memory_space<vmem>>, vector<8x128xf32>
    tpu.vector_store %arg12[%c0_31, %c0_32], %73 {strides = array<i32>} : memref<16x256xf32, #tpu.memory_space<vmem>>, vector<8x128xf32>,
    %c0_33 = arith.constant 0 : index
    %c128_34 = arith.constant 128 : index
    %75 = vector.load %arg10[%c0_33, %c128_34] : memref<16x256xf32, #tpu.memory_space<vmem>>, vector<8x128xf32>
    %c0_35 = arith.constant 0 : index
    %c0_36 = arith.constant 0 : index
    %76 = vector.load %arg11[%c0_35, %c0_36] : memref<16x128xf32, #tpu.memory_space<vmem>>, vector<8x128xf32>
    %77 = vector.extract_strided_slice %20 {offsets = [0, 0], sizes = [8, 128], strides = [1, 1]} : vector<16x128xf32> to vector<8x128xf32>
    %cst_37 = arith.constant dense<0.000000e+00> : vector<8x8xf32>
    %78 = tpu.matmul %75, %76, %cst_37 {dimension_numbers = #tpu.dot_dimension_numbers<[1], [1], [0], [0], [0, 0, 1, 0], [], []>} : vector<8x128xf32>, vector<8x128xf32>, vector<8x8xf32> -> vector<8x8xf32>
    %cst_38 = arith.constant 0.0883883461 : f32
    %79 = vector.broadcast %cst_38 : f32 to vector<8x8xf32>
    %80 = arith.mulf %78, %79 : vector<8x8xf32>
    %81 = arith.addf %80, %55 : vector<8x8xf32>
    %cst_39 = arith.constant dense<0xFF800000> : vector<8xf32>
    %82 = vector.multi_reduction <maximumf>, %81, %cst_39 [1] : vector<8x8xf32> to vector<8xf32>
    %83 = vector.shape_cast %82 : vector<8xf32> to vector<8x1xf32>
    %84 = vector.broadcast %83 : vector<8x1xf32> to vector<8x8xf32>
    %85 = arith.subf %81, %84 : vector<8x8xf32>
    %86 = math.exp %85 : vector<8x8xf32>
    %cst_40 = arith.constant dense<0.000000e+00> : vector<8xf32>
    %87 = vector.multi_reduction <add>, %86, %cst_40 [1] : vector<8x8xf32> to vector<8xf32>
    %88 = vector.shape_cast %87 : vector<8xf32> to vector<8x1xf32>
    %89 = tpu.reciprocal %88 {approx = true} : vector<8x1xf32> -> vector<8x1xf32>
    %90 = vector.broadcast %89 : vector<8x1xf32> to vector<8x8xf32>
    %91 = arith.mulf %86, %90 : vector<8x8xf32>
    %cst_41 = arith.constant dense<0.000000e+00> : vector<8x128xf32>
    %92 = tpu.matmul %91, %77, %cst_41 {dimension_numbers = #tpu.dot_dimension_numbers<[1], [0], [0], [1], [0, 0, 1, 1], [], []>} : vector<8x8xf32>, vector<8x128xf32>, vector<8x128xf32> -> vector<8x128xf32>
    %c0_42 = arith.constant 0 : index
    %c128_43 = arith.constant 128 : index
    %93 = vector.load %arg12[%c0_42, %c128_43] : memref<16x256xf32, #tpu.memory_space<vmem>>, vector<8x128xf32>
    tpu.vector_store %arg12[%c0_42, %c128_43], %92 {strides = array<i32>} : memref<16x256xf32, #tpu.memory_space<vmem>>, vector<8x128xf32>,
    %c8 = arith.constant 8 : index
    %c0_44 = arith.constant 0 : index
    %94 = vector.load %arg10[%c8, %c0_44] : memref<16x256xf32, #tpu.memory_space<vmem>>, vector<8x128xf32>
    %c8_45 = arith.constant 8 : index
    %c0_46 = arith.constant 0 : index
    %95 = vector.load %arg11[%c8_45, %c0_46] : memref<16x128xf32, #tpu.memory_space<vmem>>, vector<8x128xf32>
    %96 = vector.extract_strided_slice %20 {offsets = [8, 0], sizes = [8, 128], strides = [1, 1]} : vector<16x128xf32> to vector<8x128xf32>
    %cst_47 = arith.constant dense<0.000000e+00> : vector<8x8xf32>
    %97 = tpu.matmul %94, %95, %cst_47 {dimension_numbers = #tpu.dot_dimension_numbers<[1], [1], [0], [0], [0, 0, 1, 0], [], []>} : vector<8x128xf32>, vector<8x128xf32>, vector<8x8xf32> -> vector<8x8xf32>
    %cst_48 = arith.constant 0.0883883461 : f32
    %98 = vector.broadcast %cst_48 : f32 to vector<8x8xf32>
    %99 = arith.mulf %97, %98 : vector<8x8xf32>
    %100 = arith.addf %99, %55 : vector<8x8xf32>
    %cst_49 = arith.constant dense<0xFF800000> : vector<8xf32>
    %101 = vector.multi_reduction <maximumf>, %100, %cst_49 [1] : vector<8x8xf32> to vector<8xf32>
    %102 = vector.shape_cast %101 : vector<8xf32> to vector<8x1xf32>
    %103 = vector.broadcast %102 : vector<8x1xf32> to vector<8x8xf32>
    %104 = arith.subf %100, %103 : vector<8x8xf32>
    %105 = math.exp %104 : vector<8x8xf32>
    %cst_50 = arith.constant dense<0.000000e+00> : vector<8xf32>
    %106 = vector.multi_reduction <add>, %105, %cst_50 [1] : vector<8x8xf32> to vector<8xf32>
    %107 = vector.shape_cast %106 : vector<8xf32> to vector<8x1xf32>
    %108 = tpu.reciprocal %107 {approx = true} : vector<8x1xf32> -> vector<8x1xf32>
    %109 = vector.broadcast %108 : vector<8x1xf32> to vector<8x8xf32>
    %110 = arith.mulf %105, %109 : vector<8x8xf32>
    %cst_51 = arith.constant dense<0.000000e+00> : vector<8x128xf32>
    %111 = tpu.matmul %110, %96, %cst_51 {dimension_numbers = #tpu.dot_dimension_numbers<[1], [0], [0], [1], [0, 0, 1, 1], [], []>} : vector<8x8xf32>, vector<8x128xf32>, vector<8x128xf32> -> vector<8x128xf32>
    %c8_52 = arith.constant 8 : index
    %c0_53 = arith.constant 0 : index
    %112 = vector.load %arg12[%c8_52, %c0_53] : memref<16x256xf32, #tpu.memory_space<vmem>>, vector<8x128xf32>
    tpu.vector_store %arg12[%c8_52, %c0_53], %111 {strides = array<i32>} : memref<16x256xf32, #tpu.memory_space<vmem>>, vector<8x128xf32>,
    %c8_54 = arith.constant 8 : index
    %c128_55 = arith.constant 128 : index
    %113 = vector.load %arg10[%c8_54, %c128_55] : memref<16x256xf32, #tpu.memory_space<vmem>>, vector<8x128xf32>
    %c8_56 = arith.constant 8 : index
    %c0_57 = arith.constant 0 : index
    %114 = vector.load %arg11[%c8_56, %c0_57] : memref<16x128xf32, #tpu.memory_space<vmem>>, vector<8x128xf32>
    %115 = vector.extract_strided_slice %20 {offsets = [8, 0], sizes = [8, 128], strides = [1, 1]} : vector<16x128xf32> to vector<8x128xf32>
    %cst_58 = arith.constant dense<0.000000e+00> : vector<8x8xf32>
    %116 = tpu.matmul %113, %114, %cst_58 {dimension_numbers = #tpu.dot_dimension_numbers<[1], [1], [0], [0], [0, 0, 1, 0], [], []>} : vector<8x128xf32>, vector<8x128xf32>, vector<8x8xf32> -> vector<8x8xf32>
    %cst_59 = arith.constant 0.0883883461 : f32
    %117 = vector.broadcast %cst_59 : f32 to vector<8x8xf32>
    %118 = arith.mulf %116, %117 : vector<8x8xf32>
    %119 = arith.addf %118, %55 : vector<8x8xf32>
    %cst_60 = arith.constant dense<0xFF800000> : vector<8xf32>
    %120 = vector.multi_reduction <maximumf>, %119, %cst_60 [1] : vector<8x8xf32> to vector<8xf32>
    %121 = vector.shape_cast %120 : vector<8xf32> to vector<8x1xf32>
    %122 = vector.broadcast %121 : vector<8x1xf32> to vector<8x8xf32>
    %123 = arith.subf %119, %122 : vector<8x8xf32>
    %124 = math.exp %123 : vector<8x8xf32>
    %cst_61 = arith.constant dense<0.000000e+00> : vector<8xf32>
    %125 = vector.multi_reduction <add>, %124, %cst_61 [1] : vector<8x8xf32> to vector<8xf32>
    %126 = vector.shape_cast %125 : vector<8xf32> to vector<8x1xf32>
    %127 = tpu.reciprocal %126 {approx = true} : vector<8x1xf32> -> vector<8x1xf32>
    %128 = vector.broadcast %127 : vector<8x1xf32> to vector<8x8xf32>
    %129 = arith.mulf %124, %128 : vector<8x8xf32>
    %cst_62 = arith.constant dense<0.000000e+00> : vector<8x128xf32>
    %130 = tpu.matmul %129, %115, %cst_62 {dimension_numbers = #tpu.dot_dimension_numbers<[1], [0], [0], [1], [0, 0, 1, 1], [], []>} : vector<8x8xf32>, vector<8x128xf32>, vector<8x128xf32> -> vector<8x128xf32>
    %c8_63 = arith.constant 8 : index
    %c128_64 = arith.constant 128 : index
    %131 = vector.load %arg12[%c8_63, %c128_64] : memref<16x256xf32, #tpu.memory_space<vmem>>, vector<8x128xf32>
    tpu.vector_store %arg12[%c8_63, %c128_64], %130 {strides = array<i32>} : memref<16x256xf32, #tpu.memory_space<vmem>>, vector<8x128xf32>,
    %c0_65 = arith.constant 0 : index
    %c0_66 = arith.constant 0 : index
    %132 = vector.load %arg12[%c0_65, %c0_66] : memref<16x256xf32, #tpu.memory_space<vmem>>, vector<16x256xf32>
    %c0_67 = arith.constant 0 : index
    %c0_68 = arith.constant 0 : index
    %133 = vector.load %arg6[%c0_67, %c0_68] : memref<256x256xf32, #tpu.memory_space<vmem>>, vector<256x256xf32>
    %cst_69 = arith.constant dense<0.000000e+00> : vector<16x256xf32>
    %134 = tpu.matmul %132, %133, %cst_69 {dimension_numbers = #tpu.dot_dimension_numbers<[1], [0], [0], [1], [0, 0, 1, 1], [], []>} : vector<16x256xf32>, vector<256x256xf32>, vector<16x256xf32> -> vector<16x256xf32>
    %135 = arith.addf %0, %134 : vector<16x256xf32>
    %c0_70 = arith.constant 0 : index
    %c0_71 = arith.constant 0 : index
    %136 = vector.load %arg4[%c0_70, %c0_71] : memref<1x256xf32, #tpu.memory_space<vmem>>, vector<1x256xf32>
    %137 = arith.mulf %135, %135 : vector<16x256xf32>
    %cst_72 = arith.constant dense<0.000000e+00> : vector<16xf32>
    %138 = vector.multi_reduction <add>, %137, %cst_72 [1] : vector<16x256xf32> to vector<16xf32>
    %139 = vector.shape_cast %138 : vector<16xf32> to vector<16x1xf32>
    %cst_73 = arith.constant 2.560000e+02 : f32
    %140 = vector.broadcast %cst_73 : f32 to vector<16x1xf32>
    %141 = arith.divf %139, %140 : vector<16x1xf32>
    %cst_74 = arith.constant 9.99999974E-6 : f32
    %142 = vector.broadcast %cst_74 : f32 to vector<16x1xf32>
    %143 = arith.addf %141, %142 : vector<16x1xf32>
    %144 = math.rsqrt %143 : vector<16x1xf32>
    %145 = vector.broadcast %144 : vector<16x1xf32> to vector<16x256xf32>
    %146 = arith.mulf %135, %145 : vector<16x256xf32>
    %147 = vector.broadcast %136 : vector<1x256xf32> to vector<16x256xf32>
    %148 = arith.mulf %146, %147 : vector<16x256xf32>
    %c0_75 = arith.constant 0 : index
    %c0_76 = arith.constant 0 : index
    %149 = vector.load %arg7[%c0_75, %c0_76] : memref<256x1024xf32, #tpu.memory_space<vmem>>, vector<256x1024xf32>
    %cst_77 = arith.constant dense<0.000000e+00> : vector<16x1024xf32>
    %150 = tpu.matmul %148, %149, %cst_77 {dimension_numbers = #tpu.dot_dimension_numbers<[1], [0], [0], [1], [0, 0, 1, 1], [], []>} : vector<16x256xf32>, vector<256x1024xf32>, vector<16x1024xf32> -> vector<16x1024xf32>
    %151 = vector.extract_strided_slice %150 {offsets = [0, 0], sizes = [16, 512], strides = [1, 1]} : vector<16x1024xf32> to vector<16x512xf32>
    %152 = vector.extract_strided_slice %150 {offsets = [0, 512], sizes = [16, 512], strides = [1, 1]} : vector<16x1024xf32> to vector<16x512xf32>
    %153 = arith.negf %151 : vector<16x512xf32>
    %154 = math.exp %153 : vector<16x512xf32>
    %cst_78 = arith.constant 1.000000e+00 : f32
    %155 = vector.broadcast %cst_78 : f32 to vector<16x512xf32>
    %156 = arith.addf %155, %154 : vector<16x512xf32>
    %157 = arith.divf %155, %156 : vector<16x512xf32>
    %158 = arith.mulf %151, %157 : vector<16x512xf32>
    %159 = arith.mulf %152, %158 : vector<16x512xf32>
    %c0_79 = arith.constant 0 : index
    %c0_80 = arith.constant 0 : index
    %160 = vector.load %arg8[%c0_79, %c0_80] : memref<512x256xf32, #tpu.memory_space<vmem>>, vector<512x256xf32>
    %cst_81 = arith.constant dense<0.000000e+00> : vector<16x256xf32>
    %161 = tpu.matmul %159, %160, %cst_81 {dimension_numbers = #tpu.dot_dimension_numbers<[1], [0], [0], [1], [0, 0, 1, 1], [], []>} : vector<16x512xf32>, vector<512x256xf32>, vector<16x256xf32> -> vector<16x256xf32>
    %162 = arith.addf %135, %161 : vector<16x256xf32>
    %c0_82 = arith.constant 0 : index
    %c0_83 = arith.constant 0 : index
    %163 = vector.load %arg9[%c0_82, %c0_83] : memref<16x256xf32, #tpu.memory_space<vmem>>, vector<16x256xf32>
    tpu.vector_store %arg9[%c0_82, %c0_83], %162 {strides = array<i32>} : memref<16x256xf32, #tpu.memory_space<vmem>>, vector<16x256xf32>,
    return
  }
}

</mosaic_0001>

<llo_original>
// kernel: tpu_custom_call.1
$region0: #{tpu_custom_call.1}
  #allocation0 [shape = 'u32[]', space=smem, size = 0x4, offset = 0x4, fixed_abs, tag = 'smem constant byte address 0x4 - core index']
  #allocation1 [shape = 'u32[72,128]{1,0:T(1,128)}', space=vmem, size = 0x9000, scoped, tag = 'internal scratch']
  #allocation2 [shape = 'f32[16,256]{1,0:T(8,128)}', space=vmem, size = 0x4000, scoped, tag = 'scratch operand']
  #allocation3 [shape = 'f32[16,128]{1,0:T(8,128)}', space=vmem, size = 0x2000, scoped, tag = 'scratch operand']
  #allocation4 [shape = 'f32[16,256]{1,0:T(8,128)}', space=vmem, size = 0x4000, scoped, tag = 'scratch operand']
  %s0 = inlined_call_operand.hbm [shape: f32[16,256], index: 0, kind: input, shape index: {}, may-alias: {0,9}]
  %s1 = inlined_call_operand.vmem [shape: f32[16,128], index: 1, kind: input, shape index: {}]
  %s2 = inlined_call_operand.vmem [shape: f32[16,128], index: 2, kind: input, shape index: {}]
  %s3 = inlined_call_operand.vmem [shape: f32[1,256], index: 3, kind: input, shape index: {}]
  %s4 = inlined_call_operand.vmem [shape: f32[1,256], index: 4, kind: input, shape index: {}]
  %s5 = inlined_call_operand.hbm [shape: f32[256,512], index: 5, kind: input, shape index: {}]
  %s6 = inlined_call_operand.hbm [shape: f32[256,256], index: 6, kind: input, shape index: {}]
  %s7 = inlined_call_operand.hbm [shape: f32[256,1024], index: 7, kind: input, shape index: {}]
  %s8 = inlined_call_operand.hbm [shape: f32[512,256], index: 8, kind: input, shape index: {}]
  %s9 = inlined_call_operand.hbm [shape: f32[16,256], index: 9, kind: output, shape index: {}, may-alias: {0,9}]
  %s10 = sld [smem:[#allocation0]]
  $region66: #{tpu_custom_call.1} parent=0
    _
  %s12 = ssub.s32 1, %s10
  %s13 = scalar_select 0, %s12, %s10
  $region1: #{tpu_custom_call.1} parent=0
    #allocation5 [shape = 'u8[16384]{0}', space=vmem, size = 0x4000, scoped, tag = 'input window, operand 0, single buffered']
    #allocation6 [shape = 's32[1]{0}', space=sflag, size = 0x4, scoped, tag = 'scoped memory for tpu_custom_call.1']
    #allocation7 [shape = 's32[1]{0}', space=sflag, size = 0x4, scoped, tag = 'scoped memory for tpu_custom_call.1']
    #allocation8 [shape = 'u8[524288]{0}', space=vmem, size = 0x80000, scoped, tag = 'input window, operand 5, single buffered']
    #allocation9 [shape = 's32[1]{0}', space=sflag, size = 0x4, scoped, tag = 'scoped memory for tpu_custom_call.1']
    #allocation10 [shape = 'u8[262144]{0}', space=vmem, size = 0x40000, scoped, tag = 'input window, operand 6, single buffered']
    #allocation11 [shape = 'u8[1048576]{0}', space=vmem, size = 0x100000, scoped, tag = 'input window, operand 7, single buffered']
    #allocation12 [shape = 's32[1]{0}', space=sflag, size = 0x4, scoped, tag = 'scoped memory for tpu_custom_call.1']
    #allocation13 [shape = 'u8[524288]{0}', space=vmem, size = 0x80000, scoped, tag = 'input window, operand 8, single buffered']
    #allocation14 [shape = 'u8[16384]{0}', space=vmem, size = 0x4000, scoped, tag = 'output window, operand 0, single buffered']
    %14 = vsyncpa [#allocation6], 0
    %15 = vsyncpa [#allocation9], 0
    %16 = vsyncpa [#allocation12], 0
    %17 = vsyncpa [#allocation7], 0
    // Predicated region
    $region2: #{tpu_custom_call.1} parent=1 // pred_check
      _
    $region3: #{tpu_custom_call.1} parent=1 // pred_check_branch
      %19 = sbr.rel (0) target = $region5
    $region4: #{tpu_custom_call.1} parent=1 // pred_region
      %21 = vsyncadd [#allocation6], 0
      %s22 = sshll.u32 %s0, 4
      %s23 = int_to_ptr.hbm [resolvable:$true] %s22
      %s24 = sshll.u32 [#allocation5], 4
      %s25 = int_to_ptr.vmem [resolvable:$true] %s24
      %30 = dma.hbm_to_vmem [thread:$0]  %s23, 512, %s25, [#allocation6], 256, 256, 16
    $region5: #{tpu_custom_call.1} parent=1 // pred_fallthru
      _
    // Predicated region
    $region6: #{tpu_custom_call.1} parent=1 // pred_check
      _
    $region7: #{tpu_custom_call.1} parent=1 // pred_check_branch
      %32 = sbr.rel (0) target = $region9
    $region8: #{tpu_custom_call.1} parent=1 // pred_region
      _
    $region9: #{tpu_custom_call.1} parent=1 // pred_fallthru
      _
    // Predicated region
    $region10: #{tpu_custom_call.1} parent=1 // pred_check
      _
    $region11: #{tpu_custom_call.1} parent=1 // pred_check_branch
      %34 = sbr.rel (0) target = $region13
    $region12: #{tpu_custom_call.1} parent=1 // pred_region
      _
    $region13: #{tpu_custom_call.1} parent=1 // pred_fallthru
      _
    // Predicated region
    $region14: #{tpu_custom_call.1} parent=1 // pred_check
      _
    $region15: #{tpu_custom_call.1} parent=1 // pred_check_branch
      %36 = sbr.rel (0) target = $region17
    $region16: #{tpu_custom_call.1} parent=1 // pred_region
      _
    $region17: #{tpu_custom_call.1} parent=1 // pred_fallthru
      _
    // Predicated region
    $region18: #{tpu_custom_call.1} parent=1 // pred_check
      _
    $region19: #{tpu_custom_call.1} parent=1 // pred_check_branch
      %38 = sbr.rel (0) target = $region21
    $region20: #{tpu_custom_call.1} parent=1 // pred_region
      _
    $region21: #{tpu_custom_call.1} parent=1 // pred_fallthru
      _
    // Predicated region
    $region22: #{tpu_custom_call.1} parent=1 // pred_check
      _
    $region23: #{tpu_custom_call.1} parent=1 // pred_check_branch
      %40 = sbr.rel (0) target = $region25
    $region24: #{tpu_custom_call.1} parent=1 // pred_region
      %42 = vsyncadd [#allocation9], 0
      %s43 = sshll.u32 %s5, 4
      %s44 = int_to_ptr.hbm [resolvable:$true] %s43
      %s45 = sshll.u32 [#allocation8], 4
      %s46 = int_to_ptr.vmem [resolvable:$true] %s45
      %51 = dma.hbm_to_vmem [thread:$0]  %s44, 16384, %s46, [#allocation9], 512, 512, 32
    $region25: #{tpu_custom_call.1} parent=1 // pred_fallthru
      _
    // Predicated region
    $region26: #{tpu_custom_call.1} parent=1 // pred_check
      _
    $region27: #{tpu_custom_call.1} parent=1 // pred_check_branch
      %53 = sbr.rel (0) target = $region29
    $region28: #{tpu_custom_call.1} parent=1 // pred_region
      %55 = vsyncadd [#allocation9], 0
      %s56 = sshll.u32 %s6, 4
      %s57 = int_to_ptr.hbm [resolvable:$true] %s56
      %s58 = sshll.u32 [#allocation10], 4
      %s59 = int_to_ptr.vmem [resolvable:$true] %s58
      %64 = dma.hbm_to_vmem [thread:$0]  %s57, 8192, %s59, [#allocation9], 256, 256, 16
    $region29: #{tpu_custom_call.1} parent=1 // pred_fallthru
      _
    // Predicated region
    $region30: #{tpu_custom_call.1} parent=1 // pred_check
      _
    $region31: #{tpu_custom_call.1} parent=1 // pred_check_branch
      %66 = sbr.rel (0) target = $region33
    $region32: #{tpu_custom_call.1} parent=1 // pred_region
      %68 = vsyncadd [#allocation12], 0
      %s69 = sshll.u32 %s7, 4
      %s70 = int_to_ptr.hbm [resolvable:$true] %s69
      %s71 = sshll.u32 [#allocation11], 4
      %s72 = int_to_ptr.vmem [resolvable:$true] %s71
      %77 = dma.hbm_to_vmem [thread:$0]  %s70, 32768, %s72, [#allocation12], 1024, 1024, 64
    $region33: #{tpu_custom_call.1} parent=1 // pred_fallthru
      _
    // Predicated region
    $region34: #{tpu_custom_call.1} parent=1 // pred_check
      _
    $region35: #{tpu_custom_call.1} parent=1 // pred_check_branch
      %79 = sbr.rel (0) target = $region37
    $region36: #{tpu_custom_call.1} parent=1 // pred_region
      %81 = vsyncadd [#allocation12], 0
      %s82 = sshll.u32 %s8, 4
      %s83 = int_to_ptr.hbm [resolvable:$true] %s82
      %s84 = sshll.u32 [#allocation13], 4
      %s85 = int_to_ptr.vmem [resolvable:$true] %s84
      %90 = dma.hbm_to_vmem [thread:$0]  %s83, 16384, %s85, [#allocation12], 256, 256, 16
    $region37: #{tpu_custom_call.1} parent=1 // pred_fallthru
      _
    // Predicated region
    $region38: #{tpu_custom_call.1} parent=1 // pred_check
      _
    $region39: #{tpu_custom_call.1} parent=1 // pred_check_branch
      %92 = sbr.rel (0) target = $region41
    $region40: #{tpu_custom_call.1} parent=1 // pred_region
      %94 = dma.done [#allocation6], 512
    $region41: #{tpu_custom_call.1} parent=1 // pred_fallthru
      _
    // Predicated region
    $region42: #{tpu_custom_call.1} parent=1 // pred_check
      _
    $region43: #{tpu_custom_call.1} parent=1 // pred_check_branch
      %96 = sbr.rel (0) target = $region45
    $region44: #{tpu_custom_call.1} parent=1 // pred_region
      %98 = dma.done [#allocation9], 16384
    $region45: #{tpu_custom_call.1} parent=1 // pred_fallthru
      _
    // Predicated region
    $region46: #{tpu_custom_call.1} parent=1 // pred_check
      _
    $region47: #{tpu_custom_call.1} parent=1 // pred_check_branch
      %100 = sbr.rel (0) target = $region49
    $region48: #{tpu_custom_call.1} parent=1 // pred_region
      %102 = dma.done [#allocation9], 8192
    $region49: #{tpu_custom_call.1} parent=1 // pred_fallthru
      _
    // Predicated region
    $region50: #{tpu_custom_call.1} parent=1 // pred_check
      _
    $region51: #{tpu_custom_call.1} parent=1 // pred_check_branch
      %104 = sbr.rel (0) target = $region53
    $region52: #{tpu_custom_call.1} parent=1 // pred_region
      %106 = dma.done [#allocation12], 32768
    $region53: #{tpu_custom_call.1} parent=1 // pred_fallthru
      _
    // Predicated region
    $region54: #{tpu_custom_call.1} parent=1 // pred_check
      _
    $region55: #{tpu_custom_call.1} parent=1 // pred_check_branch
      %108 = sbr.rel (0) target = $region57
    $region56: #{tpu_custom_call.1} parent=1 // pred_region
      %110 = dma.done [#allocation12], 16384
    $region57: #{tpu_custom_call.1} parent=1 // pred_fallthru
      _
    %v111 = vld [vmem:[#allocation5] sm:$0xff]
    %v112 = vld [vmem:[#allocation5 + $0x8] sm:$0xff]
    %v113 = vld [vmem:[#allocation5 + $0x10] sm:$0xff]
    %v114 = vld [vmem:[#allocation5 + $0x18] sm:$0xff]
    %v115 = vld [vmem:[%s1] sm:$0xff]
    %v116 = vld [vmem:[%s1 + $0x8] sm:$0xff]
    %v117 = vld [vmem:[%s2] sm:$0xff]
    %v118 = vld [vmem:[%s2 + $0x8] sm:$0xff]
    %v119 = vld [vmem:[%s3] sm:$0x3]
    %v120 = vmul.f32 %v111, %v111
    %v121 = vmul.f32 %v112, %v112
    %v122 = vmul.f32 %v113, %v113
    %v123 = vmul.f32 %v114, %v114
    %v124 = vadd.f32 %v120, %v121
    %125 = vadd.xlane.f32.xlu0 %v124
    %v126 = vpop.xlane.xlu0 %125
    %v127 = vadd.f32 %v122, %v123
    %128 = vadd.xlane.f32.xlu0 %v127
    %v129 = vpop.xlane.xlu0 %128
    %v130 = vrcp.pop 256.0
    %v131 = vmul.f32 256.0, %v130
    %v132 = vsub.f32 1.0, %v131
    %v133 = vmul.f32 %v130, %v132
    %v134 = vadd.f32 %v130, %v133
    %vm135 = vweird.f32 %v130
    %v136 = vsel %vm135, %v130, %v134
    %v137 = vmul.f32 %v126, %v136
    %v138 = vmul.f32 %v129, %v136
    %v139 = vadd.f32 %v137, 1e-05
    %v140 = vadd.f32 %v138, 1e-05
    %v141 = vrsqrt.pop %v139
    %v142 = vmul.f32 %v141, %v139
    %v143 = vmul.f32 %v142, %v141
    %v144 = vmul.f32 0.5, %v143
    %v145 = vsub.f32 1.5, %v144
    %v146 = vmul.f32 %v141, %v145
    %vm147 = vweird.f32 %v139
    %vm148 = vweird.f32 %v141
    %vm149 = vmor %vm147, %vm148
    %v150 = vsel %vm149, %v141, %v146
    %v151 = vrsqrt.pop %v140
    %v152 = vmul.f32 %v151, %v140
    %v153 = vmul.f32 %v152, %v151
    %v154 = vmul.f32 0.5, %v153
    %v155 = vsub.f32 1.5, %v154
    %v156 = vmul.f32 %v151, %v155
    %vm157 = vweird.f32 %v140
    %vm158 = vweird.f32 %v151
    %vm159 = vmor %vm157, %vm158
    %v160 = vsel %vm159, %v151, %v156
    %v161 = vmul.f32 %v111, %v150
    %v162 = vmul.f32 %v112, %v150
    %v163 = vmul.f32 %v113, %v160
    %v164 = vmul.f32 %v114, %v160
    %v166 = vperm.slane %v119, 0
    %v167 = vperm.slane %v119, 1
    %v170 = vmul.f32 %v161, %v166
    %v171 = vmul.f32 %v162, %v167
    %v172 = vmul.f32 %v163, %v166
    %v173 = vmul.f32 %v164, %v167
    %v174 = vld [vmem:[#allocation8] sm:$0xff]
    %v175 = vld [vmem:[#allocation8 + $0x8] sm:$0xff]
    %v176 = vld [vmem:[#allocation8 + $0x10] sm:$0xff]
    %v177 = vld [vmem:[#allocation8 + $0x18] sm:$0xff]
    %v178 = vld [vmem:[#allocation8 + $0x20] sm:$0xff]
    %v179 = vld [vmem:[#allocation8 + $0x28] sm:$0xff]
    %v180 = vld [vmem:[#allocation8 + $0x30] sm:$0xff]
    %v181 = vld [vmem:[#allocation8 + $0x38] sm:$0xff]
    %v182 = vld [vmem:[#allocation8 + $0x40] sm:$0xff]
    %v183 = vld [vmem:[#allocation8 + $0x48] sm:$0xff]
    %v184 = vld [vmem:[#allocation8 + $0x50] sm:$0xff]
    %v185 = vld [vmem:[#allocation8 + $0x58] sm:$0xff]
    %v186 = vld [vmem:[#allocation8 + $0x60] sm:$0xff]
    %v187 = vld [vmem:[#allocation8 + $0x68] sm:$0xff]
    %v188 = vld [vmem:[#allocation8 + $0x70] sm:$0xff]
    %v189 = vld [vmem:[#allocation8 + $0x78] sm:$0xff]
    %v190 = vld [vmem:[#allocation8 + $0x80] sm:$0xff]
    %v191 = vld [vmem:[#allocation8 + $0x88] sm:$0xff]
    %v192 = vld [vmem:[#allocation8 + $0x90] sm:$0xff]
    %v193 = vld [vmem:[#allocation8 + $0x98] sm:$0xff]
    %v194 = vld [vmem:[#allocation8 + $0xa0] sm:$0xff]
    %v195 = vld [vmem:[#allocation8 + $0xa8] sm:$0xff]
    %v196 = vld [vmem:[#allocation8 + $0xb0] sm:$0xff]
    %v197 = vld [vmem:[#allocation8 + $0xb8] sm:$0xff]
    %v198 = vld [vmem:[#allocation8 + $0xc0] sm:$0xff]
    %v199 = vld [vmem:[#allocation8 + $0xc8] sm:$0xff]
    %v200 = vld [vmem:[#allocation8 + $0xd0] sm:$0xff]
    %v201 = vld [vmem:[#allocation8 + $0xd8] sm:$0xff]
    %v202 = vld [vmem:[#allocation8 + $0xe0] sm:$0xff]
    %v203 = vld [vmem:[#allocation8 + $0xe8] sm:$0xff]
    %v204 = vld [vmem:[#allocation8 + $0xf0] sm:$0xff]
    %v205 = vld [vmem:[#allocation8 + $0xf8] sm:$0xff]
    %v206 = vld [vmem:[#allocation8 + $0x100] sm:$0xff]
    %v207 = vld [vmem:[#allocation8 + $0x108] sm:$0xff]
    %v208 = vld [vmem:[#allocation8 + $0x110] sm:$0xff]
    %v209 = vld [vmem:[#allocation8 + $0x118] sm:$0xff]
    %v210 = vld [vmem:[#allocation8 + $0x120] sm:$0xff]
    %v211 = vld [vmem:[#allocation8 + $0x128] sm:$0xff]
    %v212 = vld [vmem:[#allocation8 + $0x130] sm:$0xff]
    %v213 = vld [vmem:[#allocation8 + $0x138] sm:$0xff]
    %v214 = vld [vmem:[#allocation8 + $0x140] sm:$0xff]
    %v215 = vld [vmem:[#allocation8 + $0x148] sm:$0xff]
    %v216 = vld [vmem:[#allocation8 + $0x150] sm:$0xff]
    %v217 = vld [vmem:[#allocation8 + $0x158] sm:$0xff]
    %v218 = vld [vmem:[#allocation8 + $0x160] sm:$0xff]
    %v219 = vld [vmem:[#allocation8 + $0x168] sm:$0xff]
    %v220 = vld [vmem:[#allocation8 + $0x170] sm:$0xff]
    %v221 = vld [vmem:[#allocation8 + $0x178] sm:$0xff]
    %v222 = vld [vmem:[#allocation8 + $0x180] sm:$0xff]
    %v223 = vld [vmem:[#allocation8 + $0x188] sm:$0xff]
    %v224 = vld [vmem:[#allocation8 + $0x190] sm:$0xff]
    %v225 = vld [vmem:[#allocation8 + $0x198] sm:$0xff]
    %v226 = vld [vmem:[#allocation8 + $0x1a0] sm:$0xff]
    %v227 = vld [vmem:[#allocation8 + $0x1a8] sm:$0xff]
    %v228 = vld [vmem:[#allocation8 + $0x1b0] sm:$0xff]
    %v229 = vld [vmem:[#allocation8 + $0x1b8] sm:$0xff]
    %v230 = vld [vmem:[#allocation8 + $0x1c0] sm:$0xff]
    %v231 = vld [vmem:[#allocation8 + $0x1c8] sm:$0xff]
    %v232 = vld [vmem:[#allocation8 + $0x1d0] sm:$0xff]
    %v233 = vld [vmem:[#allocation8 + $0x1d8] sm:$0xff]
    %v234 = vld [vmem:[#allocation8 + $0x1e0] sm:$0xff]
    %v235 = vld [vmem:[#allocation8 + $0x1e8] sm:$0xff]
    %v236 = vld [vmem:[#allocation8 + $0x1f0] sm:$0xff]
    %v237 = vld [vmem:[#allocation8 + $0x1f8] sm:$0xff]
    %v238 = vld [vmem:[#allocation8 + $0x200] sm:$0xff]
    %v239 = vld [vmem:[#allocation8 + $0x208] sm:$0xff]
    %v240 = vld [vmem:[#allocation8 + $0x210] sm:$0xff]
    %v241 = vld [vmem:[#allocation8 + $0x218] sm:$0xff]
    %v242 = vld [vmem:[#allocation8 + $0x220] sm:$0xff]
    %v243 = vld [vmem:[#allocation8 + $0x228] sm:$0xff]
    %v244 = vld [vmem:[#allocation8 + $0x230] sm:$0xff]
    %v245 = vld [vmem:[#allocation8 + $0x238] sm:$0xff]
    %v246 = vld [vmem:[#allocation8 + $0x240] sm:$0xff]
    %v247 = vld [vmem:[#allocation8 + $0x248] sm:$0xff]
    %v248 = vld [vmem:[#allocation8 + $0x250] sm:$0xff]
    %v249 = vld [vmem:[#allocation8 + $0x258] sm:$0xff]
    %v250 = vld [vmem:[#allocation8 + $0x260] sm:$0xff]
    %v251 = vld [vmem:[#allocation8 + $0x268] sm:$0xff]
    %v252 = vld [vmem:[#allocation8 + $0x270] sm:$0xff]
    %v253 = vld [vmem:[#allocation8 + $0x278] sm:$0xff]
    %v254 = vld [vmem:[#allocation8 + $0x280] sm:$0xff]
    %v255 = vld [vmem:[#allocation8 + $0x288] sm:$0xff]
    %v256 = vld [vmem:[#allocation8 + $0x290] sm:$0xff]
    %v257 = vld [vmem:[#allocation8 + $0x298] sm:$0xff]
    %v258 = vld [vmem:[#allocation8 + $0x2a0] sm:$0xff]
    %v259 = vld [vmem:[#allocation8 + $0x2a8] sm:$0xff]
    %v260 = vld [vmem:[#allocation8 + $0x2b0] sm:$0xff]
    %v261 = vld [vmem:[#allocation8 + $0x2b8] sm:$0xff]
    %v262 = vld [vmem:[#allocation8 + $0x2c0] sm:$0xff]
    %v263 = vld [vmem:[#allocation8 + $0x2c8] sm:$0xff]
    %v264 = vld [vmem:[#allocation8 + $0x2d0] sm:$0xff]
    %v265 = vld [vmem:[#allocation8 + $0x2d8] sm:$0xff]
    %v266 = vld [vmem:[#allocation8 + $0x2e0] sm:$0xff]
    %v267 = vld [vmem:[#allocation8 + $0x2e8] sm:$0xff]
    %v268 = vld [vmem:[#allocation8 + $0x2f0] sm:$0xff]
    %v269 = vld [vmem:[#allocation8 + $0x2f8] sm:$0xff]
    %v270 = vld [vmem:[#allocation8 + $0x300] sm:$0xff]
    %v271 = vld [vmem:[#allocation8 + $0x308] sm:$0xff]
    %v272 = vld [vmem:[#allocation8 + $0x310] sm:$0xff]
    %v273 = vld [vmem:[#allocation8 + $0x318] sm:$0xff]
    %v274 = vld [vmem:[#allocation8 + $0x320] sm:$0xff]
    %v275 = vld [vmem:[#allocation8 + $0x328] sm:$0xff]
    %v276 = vld [vmem:[#allocation8 + $0x330] sm:$0xff]
    %v277 = vld [vmem:[#allocation8 + $0x338] sm:$0xff]
    %v278 = vld [vmem:[#allocation8 + $0x340] sm:$0xff]
    %v279 = vld [vmem:[#allocation8 + $0x348] sm:$0xff]
    %v280 = vld [vmem:[#allocation8 + $0x350] sm:$0xff]
    %v281 = vld [vmem:[#allocation8 + $0x358] sm:$0xff]
    %v282 = vld [vmem:[#allocation8 + $0x360] sm:$0xff]
    %v283 = vld [vmem:[#allocation8 + $0x368] sm:$0xff]
    %v284 = vld [vmem:[#allocation8 + $0x370] sm:$0xff]
    %v285 = vld [vmem:[#allocation8 + $0x378] sm:$0xff]
    %v286 = vld [vmem:[#allocation8 + $0x380] sm:$0xff]
    %v287 = vld [vmem:[#allocation8 + $0x388] sm:$0xff]
    %v288 = vld [vmem:[#allocation8 + $0x390] sm:$0xff]
    %v289 = vld [vmem:[#allocation8 + $0x398] sm:$0xff]
    %v290 = vld [vmem:[#allocation8 + $0x3a0] sm:$0xff]
    %v291 = vld [vmem:[#allocation8 + $0x3a8] sm:$0xff]
    %v292 = vld [vmem:[#allocation8 + $0x3b0] sm:$0xff]
    %v293 = vld [vmem:[#allocation8 + $0x3b8] sm:$0xff]
    %v294 = vld [vmem:[#allocation8 + $0x3c0] sm:$0xff]
    %v295 = vld [vmem:[#allocation8 + $0x3c8] sm:$0xff]
    %v296 = vld [vmem:[#allocation8 + $0x3d0] sm:$0xff]
    %v297 = vld [vmem:[#allocation8 + $0x3d8] sm:$0xff]
    %v298 = vld [vmem:[#allocation8 + $0x3e0] sm:$0xff]
    %v299 = vld [vmem:[#allocation8 + $0x3e8] sm:$0xff]
    %v300 = vld [vmem:[#allocation8 + $0x3f0] sm:$0xff]
    %v301 = vld [vmem:[#allocation8 + $0x3f8] sm:$0xff]
    %302 = vmatpush.msra.mxu0 %v234
    %303 = vmatpush.msra.mxu0 %v230
    %304 = vmatpush.msra.mxu0 %v226
    %305 = vmatpush.msra.mxu0 %v222
    %306 = vmatpush.msra.mxu0 %v218
    %307 = vmatpush.msra.mxu0 %v214
    %308 = vmatpush.msra.mxu0 %v210
    %309 = vmatpush.msra.mxu0 %v206
    %310 = vmatpush.msra.mxu0 %v202
    %311 = vmatpush.msra.mxu0 %v198
    %312 = vmatpush.msra.mxu0 %v194
    %313 = vmatpush.msra.mxu0 %v190
    %314 = vmatpush.msra.mxu0 %v186
    %315 = vmatpush.msra.mxu0 %v182
    %316 = vmatpush.msra.mxu0 %v178
    %317 = vmatpush.msra.mxu0 %v174
    %318 = vmatmul.f32.gmra.mxu0 %v170
    %v319 = vpop.f32.mrf.mxu0
    %v320 = vadd.f32 0.0, %v319
    %321 = vmatmul.f32.gmra.mxu0 %v172
    %v322 = vpop.f32.mrf.mxu0
    %v323 = vadd.f32 0.0, %v322
    %324 = vdwg.mxu0
    %325 = vmatpush.msra.mxu0 %v298
    %326 = vmatpush.msra.mxu0 %v294
    %327 = vmatpush.msra.mxu0 %v290
    %328 = vmatpush.msra.mxu0 %v286
    %329 = vmatpush.msra.mxu0 %v282
    %330 = vmatpush.msra.mxu0 %v278
    %331 = vmatpush.msra.mxu0 %v274
    %332 = vmatpush.msra.mxu0 %v270
    %333 = vmatpush.msra.mxu0 %v266
    %334 = vmatpush.msra.mxu0 %v262
    %335 = vmatpush.msra.mxu0 %v258
    %336 = vmatpush.msra.mxu0 %v254
    %337 = vmatpush.msra.mxu0 %v250
    %338 = vmatpush.msra.mxu0 %v246
    %339 = vmatpush.msra.mxu0 %v242
    %340 = vmatpush.msra.mxu0 %v238
    %341 = vmatmul.f32.gmra.mxu0 %v171
    %v342 = vpop.f32.mrf.mxu0
    %v343 = vadd.f32 %v320, %v342
    %344 = vmatmul.f32.gmra.mxu0 %v173
    %v345 = vpop.f32.mrf.mxu0
    %v346 = vadd.f32 %v323, %v345
    %347 = vdwg.mxu0
    %348 = vmatpush.msra.mxu0 %v235
    %349 = vmatpush.msra.mxu0 %v231
    %350 = vmatpush.msra.mxu0 %v227
    %351 = vmatpush.msra.mxu0 %v223
    %352 = vmatpush.msra.mxu0 %v219
    %353 = vmatpush.msra.mxu0 %v215
    %354 = vmatpush.msra.mxu0 %v211
    %355 = vmatpush.msra.mxu0 %v207
    %356 = vmatpush.msra.mxu0 %v203
    %357 = vmatpush.msra.mxu0 %v199
    %358 = vmatpush.msra.mxu0 %v195
    %359 = vmatpush.msra.mxu0 %v191
    %360 = vmatpush.msra.mxu0 %v187
    %361 = vmatpush.msra.mxu0 %v183
    %362 = vmatpush.msra.mxu0 %v179
    %363 = vmatpush.msra.mxu0 %v175
    %364 = vmatmul.f32.gmra.mxu0 %v170
    %v365 = vpop.f32.mrf.mxu0
    %v366 = vadd.f32 0.0, %v365
    %367 = vmatmul.f32.gmra.mxu0 %v172
    %v368 = vpop.f32.mrf.mxu0
    %v369 = vadd.f32 0.0, %v368
    %370 = vdwg.mxu0
    %371 = vmatpush.msra.mxu0 %v299
    %372 = vmatpush.msra.mxu0 %v295
    %373 = vmatpush.msra.mxu0 %v291
    %374 = vmatpush.msra.mxu0 %v287
    %375 = vmatpush.msra.mxu0 %v283
    %376 = vmatpush.msra.mxu0 %v279
    %377 = vmatpush.msra.mxu0 %v275
    %378 = vmatpush.msra.mxu0 %v271
    %379 = vmatpush.msra.mxu0 %v267
    %380 = vmatpush.msra.mxu0 %v263
    %381 = vmatpush.msra.mxu0 %v259
    %382 = vmatpush.msra.mxu0 %v255
    %383 = vmatpush.msra.mxu0 %v251
    %384 = vmatpush.msra.mxu0 %v247
    %385 = vmatpush.msra.mxu0 %v243
    %386 = vmatpush.msra.mxu0 %v239
    %387 = vmatmul.f32.gmra.mxu0 %v171
    %v388 = vpop.f32.mrf.mxu0
    %v389 = vadd.f32 %v366, %v388
    %390 = vmatmul.f32.gmra.mxu0 %v173
    %v391 = vpop.f32.mrf.mxu0
    %v392 = vadd.f32 %v369, %v391
    %393 = vdwg.mxu0
    %394 = vmatpush.msra.mxu0 %v236
    %395 = vmatpush.msra.mxu0 %v232
    %396 = vmatpush.msra.mxu0 %v228
    %397 = vmatpush.msra.mxu0 %v224
    %398 = vmatpush.msra.mxu0 %v220
    %399 = vmatpush.msra.mxu0 %v216
    %400 = vmatpush.msra.mxu0 %v212
    %401 = vmatpush.msra.mxu0 %v208
    %402 = vmatpush.msra.mxu0 %v204
    %403 = vmatpush.msra.mxu0 %v200
    %404 = vmatpush.msra.mxu0 %v196
    %405 = vmatpush.msra.mxu0 %v192
    %406 = vmatpush.msra.mxu0 %v188
    %407 = vmatpush.msra.mxu0 %v184
    %408 = vmatpush.msra.mxu0 %v180
    %409 = vmatpush.msra.mxu0 %v176
    %410 = vmatmul.f32.gmra.mxu0 %v170
    %v411 = vpop.f32.mrf.mxu0
    %v412 = vadd.f32 0.0, %v411
    %413 = vmatmul.f32.gmra.mxu0 %v172
    %v414 = vpop.f32.mrf.mxu0
    %v415 = vadd.f32 0.0, %v414
    %416 = vdwg.mxu0
    %417 = vmatpush.msra.mxu0 %v300
    %418 = vmatpush.msra.mxu0 %v296
    %419 = vmatpush.msra.mxu0 %v292
    %420 = vmatpush.msra.mxu0 %v288
    %421 = vmatpush.msra.mxu0 %v284
    %422 = vmatpush.msra.mxu0 %v280
    %423 = vmatpush.msra.mxu0 %v276
    %424 = vmatpush.msra.mxu0 %v272
    %425 = vmatpush.msra.mxu0 %v268
    %426 = vmatpush.msra.mxu0 %v264
    %427 = vmatpush.msra.mxu0 %v260
    %428 = vmatpush.msra.mxu0 %v256
    %429 = vmatpush.msra.mxu0 %v252
    %430 = vmatpush.msra.mxu0 %v248
    %431 = vmatpush.msra.mxu0 %v244
    %432 = vmatpush.msra.mxu0 %v240
    %433 = vmatmul.f32.gmra.mxu0 %v171
    %v434 = vpop.f32.mrf.mxu0
    %v435 = vadd.f32 %v412, %v434
    %436 = vmatmul.f32.gmra.mxu0 %v173
    %v437 = vpop.f32.mrf.mxu0
    %v438 = vadd.f32 %v415, %v437
    %439 = vdwg.mxu0
    %440 = vmatpush.msra.mxu0 %v237
    %441 = vmatpush.msra.mxu0 %v233
    %442 = vmatpush.msra.mxu0 %v229
    %443 = vmatpush.msra.mxu0 %v225
    %444 = vmatpush.msra.mxu0 %v221
    %445 = vmatpush.msra.mxu0 %v217
    %446 = vmatpush.msra.mxu0 %v213
    %447 = vmatpush.msra.mxu0 %v209
    %448 = vmatpush.msra.mxu0 %v205
    %449 = vmatpush.msra.mxu0 %v201
    %450 = vmatpush.msra.mxu0 %v197
    %451 = vmatpush.msra.mxu0 %v193
    %452 = vmatpush.msra.mxu0 %v189
    %453 = vmatpush.msra.mxu0 %v185
    %454 = vmatpush.msra.mxu0 %v181
    %455 = vmatpush.msra.mxu0 %v177
    %456 = vmatmul.f32.gmra.mxu0 %v170
    %v457 = vpop.f32.mrf.mxu0
    %v458 = vadd.f32 0.0, %v457
    %459 = vmatmul.f32.gmra.mxu0 %v172
    %v460 = vpop.f32.mrf.mxu0
    %v461 = vadd.f32 0.0, %v460
    %462 = vdwg.mxu0
    %463 = vmatpush.msra.mxu0 %v301
    %464 = vmatpush.msra.mxu0 %v297
    %465 = vmatpush.msra.mxu0 %v293
    %466 = vmatpush.msra.mxu0 %v289
    %467 = vmatpush.msra.mxu0 %v285
    %468 = vmatpush.msra.mxu0 %v281
    %469 = vmatpush.msra.mxu0 %v277
    %470 = vmatpush.msra.mxu0 %v273
    %471 = vmatpush.msra.mxu0 %v269
    %472 = vmatpush.msra.mxu0 %v265
    %473 = vmatpush.msra.mxu0 %v261
    %474 = vmatpush.msra.mxu0 %v257
    %475 = vmatpush.msra.mxu0 %v253
    %476 = vmatpush.msra.mxu0 %v249
    %477 = vmatpush.msra.mxu0 %v245
    %478 = vmatpush.msra.mxu0 %v241
    %479 = vmatmul.f32.gmra.mxu0 %v171
    %v480 = vpop.f32.mrf.mxu0
    %v481 = vadd.f32 %v458, %v480
    %482 = vmatmul.f32.gmra.mxu0 %v173
    %v483 = vpop.f32.mrf.mxu0
    %v484 = vadd.f32 %v461, %v483
    %485 = vdwg.mxu0
    %v486 = vsub.f32 0.0, %v343
    %v487 = vsub.f32 0.0, %v346
    %490 = vrot.lane.b32.xlu0 %v486, 64
    %v491 = vpop.permute.xlu0 %490
    %492 = vrot.lane.b32.xlu0 %v487, 64
    %v493 = vpop.permute.xlu0 %492
    %498 = vrot.lane.b32.xlu0 %v343, 64
    %v499 = vpop.permute.xlu0 %498
    %500 = vrot.lane.b32.xlu0 %v346, 64
    %v501 = vpop.permute.xlu0 %500
    %vm504 = vcmask 523264
    %v505 = vsel %vm504, %v491, %v499
    %v506 = vsel %vm504, %v493, %v501
    %v507 = vmul.f32 %v343, %v115
    %v508 = vmul.f32 %v346, %v116
    %v509 = vmul.f32 %v505, %v117
    %v510 = vmul.f32 %v506, %v118
    %v511 = vadd.f32 %v507, %v509
    %v512 = vadd.f32 %v508, %v510
    %513 = vst [vmem:[#allocation2] sm:$0xff] %v511
    %514 = vst [vmem:[#allocation2 + $0x10] sm:$0xff] %v512
    %v515 = vsub.f32 0.0, %v389
    %v516 = vsub.f32 0.0, %v392
    %519 = vrot.lane.b32.xlu0 %v515, 64
    %v520 = vpop.permute.xlu0 %519
    %521 = vrot.lane.b32.xlu0 %v516, 64
    %v522 = vpop.permute.xlu0 %521
    %527 = vrot.lane.b32.xlu0 %v389, 64
    %v528 = vpop.permute.xlu0 %527
    %529 = vrot.lane.b32.xlu0 %v392, 64
    %v530 = vpop.permute.xlu0 %529
    %v533 = vsel %vm504, %v520, %v528
    %v534 = vsel %vm504, %v522, %v530
    %v535 = vmul.f32 %v389, %v115
    %v536 = vmul.f32 %v392, %v116
    %v537 = vmul.f32 %v533, %v117
    %v538 = vmul.f32 %v534, %v118
    %v539 = vadd.f32 %v535, %v537
    %v540 = vadd.f32 %v536, %v538
    %541 = vst [vmem:[#allocation2 + $0x8] sm:$0xff] %v539
    %542 = vst [vmem:[#allocation2 + $0x18] sm:$0xff] %v540
    %v543 = vsub.f32 0.0, %v435
    %v544 = vsub.f32 0.0, %v438
    %547 = vrot.lane.b32.xlu0 %v543, 64
    %v548 = vpop.permute.xlu0 %547
    %549 = vrot.lane.b32.xlu0 %v544, 64
    %v550 = vpop.permute.xlu0 %549
    %555 = vrot.lane.b32.xlu0 %v435, 64
    %v556 = vpop.permute.xlu0 %555
    %557 = vrot.lane.b32.xlu0 %v438, 64
    %v558 = vpop.permute.xlu0 %557
    %v561 = vsel %vm504, %v548, %v556
    %v562 = vsel %vm504, %v550, %v558
    %v563 = vmul.f32 %v435, %v115
    %v564 = vmul.f32 %v438, %v116
    %v565 = vmul.f32 %v561, %v117
    %v566 = vmul.f32 %v562, %v118
    %v567 = vadd.f32 %v563, %v565
    %v568 = vadd.f32 %v564, %v566
    %569 = vst [vmem:[#allocation3] sm:$0xff] %v567
    %570 = vst [vmem:[#allocation3 + $0x8] sm:$0xff] %v568
    %v571 = vlaneseq
    %v572 = vshrl.u32 %v571, 7
    %v573 = vlaneseq
    %v574 = vand.u32 %v573, 127
    %vm575 = vcmp.ge.s32.totalorder %v572, %v574
    %v576 = vsel %vm575, 0.0, -1e+09
    %v577 = vld [vmem:[#allocation2] sm:$0xff]
    %v578 = vld [vmem:[#allocation3] sm:$0xff]
    %579 = vmatpush.xpose.msra.mxu0 0.0
    %580 = vmatpush.xpose.msra.mxu0 0.0
    %581 = vmatpush.xpose.msra.mxu0 0.0
    %582 = vmatpush.xpose.msra.mxu0 0.0
    %583 = vmatpush.xpose.msra.mxu0 0.0
    %584 = vmatpush.xpose.msra.mxu0 0.0
    %585 = vmatpush.xpose.msra.mxu0 0.0
    %586 = vmatpush.xpose.msra.mxu0 0.0
    %587 = vmatpush.xpose.msra.mxu0 0.0
    %588 = vmatpush.xpose.msra.mxu0 0.0
    %589 = vmatpush.xpose.msra.mxu0 0.0
    %590 = vmatpush.xpose.msra.mxu0 0.0
    %591 = vmatpush.xpose.msra.mxu0 0.0
    %592 = vmatpush.xpose.msra.mxu0 0.0
    %593 = vmatpush.xpose.msra.mxu0 0.0
    %594 = vmatpush.xpose.msra.mxu0 %v578
    %595 = vmatmul.f32.gmra.mxu0 %v577
    %v596 = vpop.f32.mrf.mxu0
    %v597 = vadd.f32 0.0, %v596
    %598 = vdwg.mxu0
    %v599 = vmul.f32 %v597, 0.088388346
    %v600 = vadd.f32 %v599, %v576
    %vm601 = vcmask 64512
    %v602 = vsel %vm601, %v600, -inf
    %603 = vmax.xlane.f32.xlu0 %v602
    %v604 = vpop.xlane.xlu0 %603
    %v605 = vsub.f32 %v600, %v604
    %v606 = vmul.f32 %v605, 1.442695
    %v607 = vpow.pop %v606
    %v608 = vsel %vm601, %v607, 0.0
    %609 = vadd.xlane.f32.xlu0 %v608
    %v610 = vpop.xlane.xlu0 %609
    %v611 = vrcp.pop %v610
    %v612 = vmul.f32 %v607, %v611
    %v614 = vsel %vm601, %v612, 0
    %616 = vmatpush.msra.mxu0 0.0
    %617 = vmatpush.msra.mxu0 0.0
    %618 = vmatpush.msra.mxu0 0.0
    %619 = vmatpush.msra.mxu0 0.0
    %620 = vmatpush.msra.mxu0 0.0
    %621 = vmatpush.msra.mxu0 0.0
    %622 = vmatpush.msra.mxu0 0.0
    %623 = vmatpush.msra.mxu0 0.0
    %624 = vmatpush.msra.mxu0 0.0
    %625 = vmatpush.msra.mxu0 0.0
    %626 = vmatpush.msra.mxu0 0.0
    %627 = vmatpush.msra.mxu0 0.0
    %628 = vmatpush.msra.mxu0 0.0
    %629 = vmatpush.msra.mxu0 0.0
    %630 = vmatpush.msra.mxu0 0.0
    %631 = vmatpush.msra.mxu0 %v481
    %632 = vmatmul.f32.gmra.mxu0 %v614
    %v633 = vpop.f32.mrf.mxu0
    %v634 = vadd.f32 0.0, %v633
    %635 = vdwg.mxu0
    %636 = vst [vmem:[#allocation4] sm:$0xff] %v634
    %v637 = vld [vmem:[#allocation2 + $0x8] sm:$0xff]
    %v638 = vld [vmem:[#allocation3] sm:$0xff]
    %639 = vmatpush.xpose.msra.mxu0 0.0
    %640 = vmatpush.xpose.msra.mxu0 0.0
    %641 = vmatpush.xpose.msra.mxu0 0.0
    %642 = vmatpush.xpose.msra.mxu0 0.0
    %643 = vmatpush.xpose.msra.mxu0 0.0
    %644 = vmatpush.xpose.msra.mxu0 0.0
    %645 = vmatpush.xpose.msra.mxu0 0.0
    %646 = vmatpush.xpose.msra.mxu0 0.0
    %647 = vmatpush.xpose.msra.mxu0 0.0
    %648 = vmatpush.xpose.msra.mxu0 0.0
    %649 = vmatpush.xpose.msra.mxu0 0.0
    %650 = vmatpush.xpose.msra.mxu0 0.0
    %651 = vmatpush.xpose.msra.mxu0 0.0
    %652 = vmatpush.xpose.msra.mxu0 0.0
    %653 = vmatpush.xpose.msra.mxu0 0.0
    %654 = vmatpush.xpose.msra.mxu0 %v638
    %655 = vmatmul.f32.gmra.mxu0 %v637
    %v656 = vpop.f32.mrf.mxu0
    %v657 = vadd.f32 0.0, %v656
    %658 = vdwg.mxu0
    %v659 = vmul.f32 %v657, 0.088388346
    %v660 = vadd.f32 %v659, %v576
    %v661 = vsel %vm601, %v660, -inf
    %662 = vmax.xlane.f32.xlu0 %v661
    %v663 = vpop.xlane.xlu0 %662
    %v664 = vsub.f32 %v660, %v663
    %v665 = vmul.f32 %v664, 1.442695
    %v666 = vpow.pop %v665
    %v667 = vsel %vm601, %v666, 0.0
    %668 = vadd.xlane.f32.xlu0 %v667
    %v669 = vpop.xlane.xlu0 %668
    %v670 = vrcp.pop %v669
    %v671 = vmul.f32 %v666, %v670
    %v673 = vsel %vm601, %v671, 0
    %675 = vmatpush.msra.mxu0 0.0
    %676 = vmatpush.msra.mxu0 0.0
    %677 = vmatpush.msra.mxu0 0.0
    %678 = vmatpush.msra.mxu0 0.0
    %679 = vmatpush.msra.mxu0 0.0
    %680 = vmatpush.msra.mxu0 0.0
    %681 = vmatpush.msra.mxu0 0.0
    %682 = vmatpush.msra.mxu0 0.0
    %683 = vmatpush.msra.mxu0 0.0
    %684 = vmatpush.msra.mxu0 0.0
    %685 = vmatpush.msra.mxu0 0.0
    %686 = vmatpush.msra.mxu0 0.0
    %687 = vmatpush.msra.mxu0 0.0
    %688 = vmatpush.msra.mxu0 0.0
    %689 = vmatpush.msra.mxu0 0.0
    %690 = vmatpush.msra.mxu0 %v481
    %691 = vmatmul.f32.gmra.mxu0 %v673
    %v692 = vpop.f32.mrf.mxu0
    %v693 = vadd.f32 0.0, %v692
    %694 = vdwg.mxu0
    %695 = vst [vmem:[#allocation4 + $0x8] sm:$0xff] %v693
    %v696 = vld [vmem:[#allocation2 + $0x10] sm:$0xff]
    %v697 = vld [vmem:[#allocation3 + $0x8] sm:$0xff]
    %698 = vmatpush.xpose.msra.mxu0 0.0
    %699 = vmatpush.xpose.msra.mxu0 0.0
    %700 = vmatpush.xpose.msra.mxu0 0.0
    %701 = vmatpush.xpose.msra.mxu0 0.0
    %702 = vmatpush.xpose.msra.mxu0 0.0
    %703 = vmatpush.xpose.msra.mxu0 0.0
    %704 = vmatpush.xpose.msra.mxu0 0.0
    %705 = vmatpush.xpose.msra.mxu0 0.0
    %706 = vmatpush.xpose.msra.mxu0 0.0
    %707 = vmatpush.xpose.msra.mxu0 0.0
    %708 = vmatpush.xpose.msra.mxu0 0.0
    %709 = vmatpush.xpose.msra.mxu0 0.0
    %710 = vmatpush.xpose.msra.mxu0 0.0
    %711 = vmatpush.xpose.msra.mxu0 0.0
    %712 = vmatpush.xpose.msra.mxu0 0.0
    %713 = vmatpush.xpose.msra.mxu0 %v697
    %714 = vmatmul.f32.gmra.mxu0 %v696
    %v715 = vpop.f32.mrf.mxu0
    %v716 = vadd.f32 0.0, %v715
    %717 = vdwg.mxu0
    %v718 = vmul.f32 %v716, 0.088388346
    %v719 = vadd.f32 %v718, %v576
    %v720 = vsel %vm601, %v719, -inf
    %721 = vmax.xlane.f32.xlu0 %v720
    %v722 = vpop.xlane.xlu0 %721
    %v723 = vsub.f32 %v719, %v722
    %v724 = vmul.f32 %v723, 1.442695
    %v725 = vpow.pop %v724
    %v726 = vsel %vm601, %v725, 0.0
    %727 = vadd.xlane.f32.xlu0 %v726
    %v728 = vpop.xlane.xlu0 %727
    %v729 = vrcp.pop %v728
    %v730 = vmul.f32 %v725, %v729
    %v732 = vsel %vm601, %v730, 0
    %734 = vmatpush.msra.mxu0 0.0
    %735 = vmatpush.msra.mxu0 0.0
    %736 = vmatpush.msra.mxu0 0.0
    %737 = vmatpush.msra.mxu0 0.0
    %738 = vmatpush.msra.mxu0 0.0
    %739 = vmatpush.msra.mxu0 0.0
    %740 = vmatpush.msra.mxu0 0.0
    %741 = vmatpush.msra.mxu0 0.0
    %742 = vmatpush.msra.mxu0 0.0
    %743 = vmatpush.msra.mxu0 0.0
    %744 = vmatpush.msra.mxu0 0.0
    %745 = vmatpush.msra.mxu0 0.0
    %746 = vmatpush.msra.mxu0 0.0
    %747 = vmatpush.msra.mxu0 0.0
    %748 = vmatpush.msra.mxu0 0.0
    %749 = vmatpush.msra.mxu0 %v484
    %750 = vmatmul.f32.gmra.mxu0 %v732
    %v751 = vpop.f32.mrf.mxu0
    %v752 = vadd.f32 0.0, %v751
    %753 = vdwg.mxu0
    %754 = vst [vmem:[#allocation4 + $0x10] sm:$0xff] %v752
    %v755 = vld [vmem:[#allocation2 + $0x18] sm:$0xff]
    %v756 = vld [vmem:[#allocation3 + $0x8] sm:$0xff]
    %757 = vmatpush.xpose.msra.mxu0 0.0
    %758 = vmatpush.xpose.msra.mxu0 0.0
    %759 = vmatpush.xpose.msra.mxu0 0.0
    %760 = vmatpush.xpose.msra.mxu0 0.0
    %761 = vmatpush.xpose.msra.mxu0 0.0
    %762 = vmatpush.xpose.msra.mxu0 0.0
    %763 = vmatpush.xpose.msra.mxu0 0.0
    %764 = vmatpush.xpose.msra.mxu0 0.0
    %765 = vmatpush.xpose.msra.mxu0 0.0
    %766 = vmatpush.xpose.msra.mxu0 0.0
    %767 = vmatpush.xpose.msra.mxu0 0.0
    %768 = vmatpush.xpose.msra.mxu0 0.0
    %769 = vmatpush.xpose.msra.mxu0 0.0
    %770 = vmatpush.xpose.msra.mxu0 0.0
    %771 = vmatpush.xpose.msra.mxu0 0.0
    %772 = vmatpush.xpose.msra.mxu0 %v756
    %773 = vmatmul.f32.gmra.mxu0 %v755
    %v774 = vpop.f32.mrf.mxu0
    %v775 = vadd.f32 0.0, %v774
    %776 = vdwg.mxu0
    %v777 = vmul.f32 %v775, 0.088388346
    %v778 = vadd.f32 %v777, %v576
    %v779 = vsel %vm601, %v778, -inf
    %780 = vmax.xlane.f32.xlu0 %v779
    %v781 = vpop.xlane.xlu0 %780
    %v782 = vsub.f32 %v778, %v781
    %v783 = vmul.f32 %v782, 1.442695
    %v784 = vpow.pop %v783
    %v785 = vsel %vm601, %v784, 0.0
    %786 = vadd.xlane.f32.xlu0 %v785
    %v787 = vpop.xlane.xlu0 %786
    %v788 = vrcp.pop %v787
    %v789 = vmul.f32 %v784, %v788
    %v791 = vsel %vm601, %v789, 0
    %793 = vmatpush.msra.mxu0 0.0
    %794 = vmatpush.msra.mxu0 0.0
    %795 = vmatpush.msra.mxu0 0.0
    %796 = vmatpush.msra.mxu0 0.0
    %797 = vmatpush.msra.mxu0 0.0
    %798 = vmatpush.msra.mxu0 0.0
    %799 = vmatpush.msra.mxu0 0.0
    %800 = vmatpush.msra.mxu0 0.0
    %801 = vmatpush.msra.mxu0 0.0
    %802 = vmatpush.msra.mxu0 0.0
    %803 = vmatpush.msra.mxu0 0.0
    %804 = vmatpush.msra.mxu0 0.0
    %805 = vmatpush.msra.mxu0 0.0
    %806 = vmatpush.msra.mxu0 0.0
    %807 = vmatpush.msra.mxu0 0.0
    %808 = vmatpush.msra.mxu0 %v484
    %809 = vmatmul.f32.gmra.mxu0 %v791
    %v810 = vpop.f32.mrf.mxu0
    %v811 = vadd.f32 0.0, %v810
    %812 = vdwg.mxu0
    %813 = vst [vmem:[#allocation4 + $0x18] sm:$0xff] %v811
    %v814 = vld [vmem:[#allocation4] sm:$0xff]
    %v815 = vld [vmem:[#allocation4 + $0x8] sm:$0xff]
    %v816 = vld [vmem:[#allocation4 + $0x10] sm:$0xff]
    %v817 = vld [vmem:[#allocation4 + $0x18] sm:$0xff]
    %v818 = vld [vmem:[#allocation10] sm:$0xff]
    %v819 = vld [vmem:[#allocation10 + $0x8] sm:$0xff]
    %v820 = vld [vmem:[#allocation10 + $0x10] sm:$0xff]
    %v821 = vld [vmem:[#allocation10 + $0x18] sm:$0xff]
    %v822 = vld [vmem:[#allocation10 + $0x20] sm:$0xff]
    %v823 = vld [vmem:[#allocation10 + $0x28] sm:$0xff]
    %v824 = vld [vmem:[#allocation10 + $0x30] sm:$0xff]
    %v825 = vld [vmem:[#allocation10 + $0x38] sm:$0xff]
    %v826 = vld [vmem:[#allocation10 + $0x40] sm:$0xff]
    %v827 = vld [vmem:[#allocation10 + $0x48] sm:$0xff]
    %v828 = vld [vmem:[#allocation10 + $0x50] sm:$0xff]
    %v829 = vld [vmem:[#allocation10 + $0x58] sm:$0xff]
    %v830 = vld [vmem:[#allocation10 + $0x60] sm:$0xff]
    %v831 = vld [vmem:[#allocation10 + $0x68] sm:$0xff]
    %v832 = vld [vmem:[#allocation10 + $0x70] sm:$0xff]
    %v833 = vld [vmem:[#allocation10 + $0x78] sm:$0xff]
    %v834 = vld [vmem:[#allocation10 + $0x80] sm:$0xff]
    %v835 = vld [vmem:[#allocation10 + $0x88] sm:$0xff]
    %v836 = vld [vmem:[#allocation10 + $0x90] sm:$0xff]
    %v837 = vld [vmem:[#allocation10 + $0x98] sm:$0xff]
    %v838 = vld [vmem:[#allocation10 + $0xa0] sm:$0xff]
    %v839 = vld [vmem:[#allocation10 + $0xa8] sm:$0xff]
    %v840 = vld [vmem:[#allocation10 + $0xb0] sm:$0xff]
    %v841 = vld [vmem:[#allocation10 + $0xb8] sm:$0xff]
    %v842 = vld [vmem:[#allocation10 + $0xc0] sm:$0xff]
    %v843 = vld [vmem:[#allocation10 + $0xc8] sm:$0xff]
    %v844 = vld [vmem:[#allocation10 + $0xd0] sm:$0xff]
    %v845 = vld [vmem:[#allocation10 + $0xd8] sm:$0xff]
    %v846 = vld [vmem:[#allocation10 + $0xe0] sm:$0xff]
    %v847 = vld [vmem:[#allocation10 + $0xe8] sm:$0xff]
    %v848 = vld [vmem:[#allocation10 + $0xf0] sm:$0xff]
    %v849 = vld [vmem:[#allocation10 + $0xf8] sm:$0xff]
    %v850 = vld [vmem:[#allocation10 + $0x100] sm:$0xff]
    %v851 = vld [vmem:[#allocation10 + $0x108] sm:$0xff]
    %v852 = vld [vmem:[#allocation10 + $0x110] sm:$0xff]
    %v853 = vld [vmem:[#allocation10 + $0x118] sm:$0xff]
    %v854 = vld [vmem:[#allocation10 + $0x120] sm:$0xff]
    %v855 = vld [vmem:[#allocation10 + $0x128] sm:$0xff]
    %v856 = vld [vmem:[#allocation10 + $0x130] sm:$0xff]
    %v857 = vld [vmem:[#allocation10 + $0x138] sm:$0xff]
    %v858 = vld [vmem:[#allocation10 + $0x140] sm:$0xff]
    %v859 = vld [vmem:[#allocation10 + $0x148] sm:$0xff]
    %v860 = vld [vmem:[#allocation10 + $0x150] sm:$0xff]
    %v861 = vld [vmem:[#allocation10 + $0x158] sm:$0xff]
    %v862 = vld [vmem:[#allocation10 + $0x160] sm:$0xff]
    %v863 = vld [vmem:[#allocation10 + $0x168] sm:$0xff]
    %v864 = vld [vmem:[#allocation10 + $0x170] sm:$0xff]
    %v865 = vld [vmem:[#allocation10 + $0x178] sm:$0xff]
    %v866 = vld [vmem:[#allocation10 + $0x180] sm:$0xff]
    %v867 = vld [vmem:[#allocation10 + $0x188] sm:$0xff]
    %v868 = vld [vmem:[#allocation10 + $0x190] sm:$0xff]
    %v869 = vld [vmem:[#allocation10 + $0x198] sm:$0xff]
    %v870 = vld [vmem:[#allocation10 + $0x1a0] sm:$0xff]
    %v871 = vld [vmem:[#allocation10 + $0x1a8] sm:$0xff]
    %v872 = vld [vmem:[#allocation10 + $0x1b0] sm:$0xff]
    %v873 = vld [vmem:[#allocation10 + $0x1b8] sm:$0xff]
    %v874 = vld [vmem:[#allocation10 + $0x1c0] sm:$0xff]
    %v875 = vld [vmem:[#allocation10 + $0x1c8] sm:$0xff]
    %v876 = vld [vmem:[#allocation10 + $0x1d0] sm:$0xff]
    %v877 = vld [vmem:[#allocation10 + $0x1d8] sm:$0xff]
    %v878 = vld [vmem:[#allocation10 + $0x1e0] sm:$0xff]
    %v879 = vld [vmem:[#allocation10 + $0x1e8] sm:$0xff]
    %v880 = vld [vmem:[#allocation10 + $0x1f0] sm:$0xff]
    %v881 = vld [vmem:[#allocation10 + $0x1f8] sm:$0xff]
    %882 = vmatpush.msra.mxu0 %v848
    %883 = vmatpush.msra.mxu0 %v846
    %884 = vmatpush.msra.mxu0 %v844
    %885 = vmatpush.msra.mxu0 %v842
    %886 = vmatpush.msra.mxu0 %v840
    %887 = vmatpush.msra.mxu0 %v838
    %888 = vmatpush.msra.mxu0 %v836
    %889 = vmatpush.msra.mxu0 %v834
    %890 = vmatpush.msra.mxu0 %v832
    %891 = vmatpush.msra.mxu0 %v830
    %892 = vmatpush.msra.mxu0 %v828
    %893 = vmatpush.msra.mxu0 %v826
    %894 = vmatpush.msra.mxu0 %v824
    %895 = vmatpush.msra.mxu0 %v822
    %896 = vmatpush.msra.mxu0 %v820
    %897 = vmatpush.msra.mxu0 %v818
    %898 = vmatmul.f32.gmra.mxu0 %v814
    %v899 = vpop.f32.mrf.mxu0
    %v900 = vadd.f32 0.0, %v899
    %901 = vmatmul.f32.gmra.mxu0 %v816
    %v902 = vpop.f32.mrf.mxu0
    %v903 = vadd.f32 0.0, %v902
    %904 = vdwg.mxu0
    %905 = vmatpush.msra.mxu0 %v880
    %906 = vmatpush.msra.mxu0 %v878
    %907 = vmatpush.msra.mxu0 %v876
    %908 = vmatpush.msra.mxu0 %v874
    %909 = vmatpush.msra.mxu0 %v872
    %910 = vmatpush.msra.mxu0 %v870
    %911 = vmatpush.msra.mxu0 %v868
    %912 = vmatpush.msra.mxu0 %v866
    %913 = vmatpush.msra.mxu0 %v864
    %914 = vmatpush.msra.mxu0 %v862
    %915 = vmatpush.msra.mxu0 %v860
    %916 = vmatpush.msra.mxu0 %v858
    %917 = vmatpush.msra.mxu0 %v856
    %918 = vmatpush.msra.mxu0 %v854
    %919 = vmatpush.msra.mxu0 %v852
    %920 = vmatpush.msra.mxu0 %v850
    %921 = vmatmul.f32.gmra.mxu0 %v815
    %v922 = vpop.f32.mrf.mxu0
    %v923 = vadd.f32 %v900, %v922
    %924 = vmatmul.f32.gmra.mxu0 %v817
    %v925 = vpop.f32.mrf.mxu0
    %v926 = vadd.f32 %v903, %v925
    %927 = vdwg.mxu0
    %928 = vmatpush.msra.mxu0 %v849
    %929 = vmatpush.msra.mxu0 %v847
    %930 = vmatpush.msra.mxu0 %v845
    %931 = vmatpush.msra.mxu0 %v843
    %932 = vmatpush.msra.mxu0 %v841
    %933 = vmatpush.msra.mxu0 %v839
    %934 = vmatpush.msra.mxu0 %v837
    %935 = vmatpush.msra.mxu0 %v835
    %936 = vmatpush.msra.mxu0 %v833
    %937 = vmatpush.msra.mxu0 %v831
    %938 = vmatpush.msra.mxu0 %v829
    %939 = vmatpush.msra.mxu0 %v827
    %940 = vmatpush.msra.mxu0 %v825
    %941 = vmatpush.msra.mxu0 %v823
    %942 = vmatpush.msra.mxu0 %v821
    %943 = vmatpush.msra.mxu0 %v819
    %944 = vmatmul.f32.gmra.mxu0 %v814
    %v945 = vpop.f32.mrf.mxu0
    %v946 = vadd.f32 0.0, %v945
    %947 = vmatmul.f32.gmra.mxu0 %v816
    %v948 = vpop.f32.mrf.mxu0
    %v949 = vadd.f32 0.0, %v948
    %950 = vdwg.mxu0
    %951 = vmatpush.msra.mxu0 %v881
    %952 = vmatpush.msra.mxu0 %v879
    %953 = vmatpush.msra.mxu0 %v877
    %954 = vmatpush.msra.mxu0 %v875
    %955 = vmatpush.msra.mxu0 %v873
    %956 = vmatpush.msra.mxu0 %v871
    %957 = vmatpush.msra.mxu0 %v869
    %958 = vmatpush.msra.mxu0 %v867
    %959 = vmatpush.msra.mxu0 %v865
    %960 = vmatpush.msra.mxu0 %v863
    %961 = vmatpush.msra.mxu0 %v861
    %962 = vmatpush.msra.mxu0 %v859
    %963 = vmatpush.msra.mxu0 %v857
    %964 = vmatpush.msra.mxu0 %v855
    %965 = vmatpush.msra.mxu0 %v853
    %966 = vmatpush.msra.mxu0 %v851
    %967 = vmatmul.f32.gmra.mxu0 %v815
    %v968 = vpop.f32.mrf.mxu0
    %v969 = vadd.f32 %v946, %v968
    %970 = vmatmul.f32.gmra.mxu0 %v817
    %v971 = vpop.f32.mrf.mxu0
    %v972 = vadd.f32 %v949, %v971
    %973 = vdwg.mxu0
    %v974 = vadd.f32 %v111, %v923
    %v975 = vadd.f32 %v112, %v969
    %v976 = vadd.f32 %v113, %v926
    %v977 = vadd.f32 %v114, %v972
    %v978 = vld [vmem:[%s4] sm:$0x3]
    %v979 = vmul.f32 %v974, %v974
    %v980 = vmul.f32 %v975, %v975
    %v981 = vmul.f32 %v976, %v976
    %v982 = vmul.f32 %v977, %v977
    %v983 = vadd.f32 %v979, %v980
    %984 = vadd.xlane.f32.xlu0 %v983
    %v985 = vpop.xlane.xlu0 %984
    %v986 = vadd.f32 %v981, %v982
    %987 = vadd.xlane.f32.xlu0 %v986
    %v988 = vpop.xlane.xlu0 %987
    %v989 = vmul.f32 %v985, %v136
    %v990 = vmul.f32 %v988, %v136
    %v991 = vadd.f32 %v989, 1e-05
    %v992 = vadd.f32 %v990, 1e-05
    %v993 = vrsqrt.pop %v991
    %v994 = vmul.f32 %v993, %v991
    %v995 = vmul.f32 %v994, %v993
    %v996 = vmul.f32 0.5, %v995
    %v997 = vsub.f32 1.5, %v996
    %v998 = vmul.f32 %v993, %v997
    %vm999 = vweird.f32 %v991
    %vm1000 = vweird.f32 %v993
    %vm1001 = vmor %vm999, %vm1000
    %v1002 = vsel %vm1001, %v993, %v998
    %v1003 = vrsqrt.pop %v992
    %v1004 = vmul.f32 %v1003, %v992
    %v1005 = vmul.f32 %v1004, %v1003
    %v1006 = vmul.f32 0.5, %v1005
    %v1007 = vsub.f32 1.5, %v1006
    %v1008 = vmul.f32 %v1003, %v1007
    %vm1009 = vweird.f32 %v992
    %vm1010 = vweird.f32 %v1003
    %vm1011 = vmor %vm1009, %vm1010
    %v1012 = vsel %vm1011, %v1003, %v1008
    %v1013 = vmul.f32 %v974, %v1002
    %v1014 = vmul.f32 %v975, %v1002
    %v1015 = vmul.f32 %v976, %v1012
    %v1016 = vmul.f32 %v977, %v1012
    %v1018 = vperm.slane %v978, 0
    %v1019 = vperm.slane %v978, 1
    %v1022 = vmul.f32 %v1013, %v1018
    %v1023 = vmul.f32 %v1014, %v1019
    %v1024 = vmul.f32 %v1015, %v1018
    %v1025 = vmul.f32 %v1016, %v1019
    %v1026 = vld [vmem:[#allocation11] sm:$0xff]
    %v1027 = vld [vmem:[#allocation11 + $0x8] sm:$0xff]
    %v1028 = vld [vmem:[#allocation11 + $0x10] sm:$0xff]
    %v1029 = vld [vmem:[#allocation11 + $0x18] sm:$0xff]
    %v1030 = vld [vmem:[#allocation11 + $0x20] sm:$0xff]
    %v1031 = vld [vmem:[#allocation11 + $0x28] sm:$0xff]
    %v1032 = vld [vmem:[#allocation11 + $0x30] sm:$0xff]
    %v1033 = vld [vmem:[#allocation11 + $0x38] sm:$0xff]
    %v1034 = vld [vmem:[#allocation11 + $0x40] sm:$0xff]
    %v1035 = vld [vmem:[#allocation11 + $0x48] sm:$0xff]
    %v1036 = vld [vmem:[#allocation11 + $0x50] sm:$0xff]
    %v1037 = vld [vmem:[#allocation11 + $0x58] sm:$0xff]
    %v1038 = vld [vmem:[#allocation11 + $0x60] sm:$0xff]
    %v1039 = vld [vmem:[#allocation11 + $0x68] sm:$0xff]
    %v1040 = vld [vmem:[#allocation11 + $0x70] sm:$0xff]
    %v1041 = vld [vmem:[#allocation11 + $0x78] sm:$0xff]
    %v1042 = vld [vmem:[#allocation11 + $0x80] sm:$0xff]
    %v1043 = vld [vmem:[#allocation11 + $0x88] sm:$0xff]
    %v1044 = vld [vmem:[#allocation11 + $0x90] sm:$0xff]
    %v1045 = vld [vmem:[#allocation11 + $0x98] sm:$0xff]
    %v1046 = vld [vmem:[#allocation11 + $0xa0] sm:$0xff]
    %v1047 = vld [vmem:[#allocation11 + $0xa8] sm:$0xff]
    %v1048 = vld [vmem:[#allocation11 + $0xb0] sm:$0xff]
    %v1049 = vld [vmem:[#allocation11 + $0xb8] sm:$0xff]
    %v1050 = vld [vmem:[#allocation11 + $0xc0] sm:$0xff]
    %v1051 = vld [vmem:[#allocation11 + $0xc8] sm:$0xff]
    %v1052 = vld [vmem:[#allocation11 + $0xd0] sm:$0xff]
    %v1053 = vld [vmem:[#allocation11 + $0xd8] sm:$0xff]
    %v1054 = vld [vmem:[#allocation11 + $0xe0] sm:$0xff]
    %v1055 = vld [vmem:[#allocation11 + $0xe8] sm:$0xff]
    %v1056 = vld [vmem:[#allocation11 + $0xf0] sm:$0xff]
    %v1057 = vld [vmem:[#allocation11 + $0xf8] sm:$0xff]
    %v1058 = vld [vmem:[#allocation11 + $0x100] sm:$0xff]
    %v1059 = vld [vmem:[#allocation11 + $0x108] sm:$0xff]
    %v1060 = vld [vmem:[#allocation11 + $0x110] sm:$0xff]
    %v1061 = vld [vmem:[#allocation11 + $0x118] sm:$0xff]
    %v1062 = vld [vmem:[#allocation11 + $0x120] sm:$0xff]
    %v1063 = vld [vmem:[#allocation11 + $0x128] sm:$0xff]
    %v1064 = vld [vmem:[#allocation11 + $0x130] sm:$0xff]
    %v1065 = vld [vmem:[#allocation11 + $0x138] sm:$0xff]
    %v1066 = vld [vmem:[#allocation11 + $0x140] sm:$0xff]
    %v1067 = vld [vmem:[#allocation11 + $0x148] sm:$0xff]
    %v1068 = vld [vmem:[#allocation11 + $0x150] sm:$0xff]
    %v1069 = vld [vmem:[#allocation11 + $0x158] sm:$0xff]
    %v1070 = vld [vmem:[#allocation11 + $0x160] sm:$0xff]
    %v1071 = vld [vmem:[#allocation11 + $0x168] sm:$0xff]
    %v1072 = vld [vmem:[#allocation11 + $0x170] sm:$0xff]
    %v1073 = vld [vmem:[#allocation11 + $0x178] sm:$0xff]
    %v1074 = vld [vmem:[#allocation11 + $0x180] sm:$0xff]
    %v1075 = vld [vmem:[#allocation11 + $0x188] sm:$0xff]
    %v1076 = vld [vmem:[#allocation11 + $0x190] sm:$0xff]
    %v1077 = vld [vmem:[#allocation11 + $0x198] sm:$0xff]
    %v1078 = vld [vmem:[#allocation11 + $0x1a0] sm:$0xff]
    %v1079 = vld [vmem:[#allocation11 + $0x1a8] sm:$0xff]
    %v1080 = vld [vmem:[#allocation11 + $0x1b0] sm:$0xff]
    %v1081 = vld [vmem:[#allocation11 + $0x1b8] sm:$0xff]
    %v1082 = vld [vmem:[#allocation11 + $0x1c0] sm:$0xff]
    %v1083 = vld [vmem:[#allocation11 + $0x1c8] sm:$0xff]
    %v1084 = vld [vmem:[#allocation11 + $0x1d0] sm:$0xff]
    %v1085 = vld [vmem:[#allocation11 + $0x1d8] sm:$0xff]
    %v1086 = vld [vmem:[#allocation11 + $0x1e0] sm:$0xff]
    %v1087 = vld [vmem:[#allocation11 + $0x1e8] sm:$0xff]
    %v1088 = vld [vmem:[#allocation11 + $0x1f0] sm:$0xff]
    %v1089 = vld [vmem:[#allocation11 + $0x1f8] sm:$0xff]
    %v1090 = vld [vmem:[#allocation11 + $0x200] sm:$0xff]
    %v1091 = vld [vmem:[#allocation11 + $0x208] sm:$0xff]
    %v1092 = vld [vmem:[#allocation11 + $0x210] sm:$0xff]
    %v1093 = vld [vmem:[#allocation11 + $0x218] sm:$0xff]
    %v1094 = vld [vmem:[#allocation11 + $0x220] sm:$0xff]
    %v1095 = vld [vmem:[#allocation11 + $0x228] sm:$0xff]
    %v1096 = vld [vmem:[#allocation11 + $0x230] sm:$0xff]
    %v1097 = vld [vmem:[#allocation11 + $0x238] sm:$0xff]
    %v1098 = vld [vmem:[#allocation11 + $0x240] sm:$0xff]
    %v1099 = vld [vmem:[#allocation11 + $0x248] sm:$0xff]
    %v1100 = vld [vmem:[#allocation11 + $0x250] sm:$0xff]
    %v1101 = vld [vmem:[#allocation11 + $0x258] sm:$0xff]
    %v1102 = vld [vmem:[#allocation11 + $0x260] sm:$0xff]
    %v1103 = vld [vmem:[#allocation11 + $0x268] sm:$0xff]
    %v1104 = vld [vmem:[#allocation11 + $0x270] sm:$0xff]
    %v1105 = vld [vmem:[#allocation11 + $0x278] sm:$0xff]
    %v1106 = vld [vmem:[#allocation11 + $0x280] sm:$0xff]
    %v1107 = vld [vmem:[#allocation11 + $0x288] sm:$0xff]
    %v1108 = vld [vmem:[#allocation11 + $0x290] sm:$0xff]
    %v1109 = vld [vmem:[#allocation11 + $0x298] sm:$0xff]
    %v1110 = vld [vmem:[#allocation11 + $0x2a0] sm:$0xff]
    %v1111 = vld [vmem:[#allocation11 + $0x2a8] sm:$0xff]
    %v1112 = vld [vmem:[#allocation11 + $0x2b0] sm:$0xff]
    %v1113 = vld [vmem:[#allocation11 + $0x2b8] sm:$0xff]
    %v1114 = vld [vmem:[#allocation11 + $0x2c0] sm:$0xff]
    %v1115 = vld [vmem:[#allocation11 + $0x2c8] sm:$0xff]
    %v1116 = vld [vmem:[#allocation11 + $0x2d0] sm:$0xff]
    %v1117 = vld [vmem:[#allocation11 + $0x2d8] sm:$0xff]
    %v1118 = vld [vmem:[#allocation11 + $0x2e0] sm:$0xff]
    %v1119 = vld [vmem:[#allocation11 + $0x2e8] sm:$0xff]
    %v1120 = vld [vmem:[#allocation11 + $0x2f0] sm:$0xff]
    %v1121 = vld [vmem:[#allocation11 + $0x2f8] sm:$0xff]
    %v1122 = vld [vmem:[#allocation11 + $0x300] sm:$0xff]
    %v1123 = vld [vmem:[#allocation11 + $0x308] sm:$0xff]
    %v1124 = vld [vmem:[#allocation11 + $0x310] sm:$0xff]
    %v1125 = vld [vmem:[#allocation11 + $0x318] sm:$0xff]
    %v1126 = vld [vmem:[#allocation11 + $0x320] sm:$0xff]
    %v1127 = vld [vmem:[#allocation11 + $0x328] sm:$0xff]
    %v1128 = vld [vmem:[#allocation11 + $0x330] sm:$0xff]
    %v1129 = vld [vmem:[#allocation11 + $0x338] sm:$0xff]
    %v1130 = vld [vmem:[#allocation11 + $0x340] sm:$0xff]
    %v1131 = vld [vmem:[#allocation11 + $0x348] sm:$0xff]
    %v1132 = vld [vmem:[#allocation11 + $0x350] sm:$0xff]
    %v1133 = vld [vmem:[#allocation11 + $0x358] sm:$0xff]
    %v1134 = vld [vmem:[#allocation11 + $0x360] sm:$0xff]
    %v1135 = vld [vmem:[#allocation11 + $0x368] sm:$0xff]
    %v1136 = vld [vmem:[#allocation11 + $0x370] sm:$0xff]
    %v1137 = vld [vmem:[#allocation11 + $0x378] sm:$0xff]
    %v1138 = vld [vmem:[#allocation11 + $0x380] sm:$0xff]
    %v1139 = vld [vmem:[#allocation11 + $0x388] sm:$0xff]
    %v1140 = vld [vmem:[#allocation11 + $0x390] sm:$0xff]
    %v1141 = vld [vmem:[#allocation11 + $0x398] sm:$0xff]
    %v1142 = vld [vmem:[#allocation11 + $0x3a0] sm:$0xff]
    %v1143 = vld [vmem:[#allocation11 + $0x3a8] sm:$0xff]
    %v1144 = vld [vmem:[#allocation11 + $0x3b0] sm:$0xff]
    %v1145 = vld [vmem:[#allocation11 + $0x3b8] sm:$0xff]
    %v1146 = vld [vmem:[#allocation11 + $0x3c0] sm:$0xff]
    %v1147 = vld [vmem:[#allocation11 + $0x3c8] sm:$0xff]
    %v1148 = vld [vmem:[#allocation11 + $0x3d0] sm:$0xff]
    %v1149 = vld [vmem:[#allocation11 + $0x3d8] sm:$0xff]
    %v1150 = vld [vmem:[#allocation11 + $0x3e0] sm:$0xff]
    %v1151 = vld [vmem:[#allocation11 + $0x3e8] sm:$0xff]
    %v1152 = vld [vmem:[#allocation11 + $0x3f0] sm:$0xff]
    %v1153 = vld [vmem:[#allocation11 + $0x3f8] sm:$0xff]
    %v1154 = vld [vmem:[#allocation11 + $0x400] sm:$0xff]
    %v1155 = vld [vmem:[#allocation11 + $0x408] sm:$0xff]
    %v1156 = vld [vmem:[#allocation11 + $0x410] sm:$0xff]
    %v1157 = vld [vmem:[#allocation11 + $0x418] sm:$0xff]
    %v1158 = vld [vmem:[#allocation11 + $0x420] sm:$0xff]
    %v1159 = vld [vmem:[#allocation11 + $0x428] sm:$0xff]
    %v1160 = vld [vmem:[#allocation11 + $0x430] sm:$0xff]
    %v1161 = vld [vmem:[#allocation11 + $0x438] sm:$0xff]
    %v1162 = vld [vmem:[#allocation11 + $0x440] sm:$0xff]
    %v1163 = vld [vmem:[#allocation11 + $0x448] sm:$0xff]
    %v1164 = vld [vmem:[#allocation11 + $0x450] sm:$0xff]
    %v1165 = vld [vmem:[#allocation11 + $0x458] sm:$0xff]
    %v1166 = vld [vmem:[#allocation11 + $0x460] sm:$0xff]
    %v1167 = vld [vmem:[#allocation11 + $0x468] sm:$0xff]
    %v1168 = vld [vmem:[#allocation11 + $0x470] sm:$0xff]
    %v1169 = vld [vmem:[#allocation11 + $0x478] sm:$0xff]
    %v1170 = vld [vmem:[#allocation11 + $0x480] sm:$0xff]
    %v1171 = vld [vmem:[#allocation11 + $0x488] sm:$0xff]
    %v1172 = vld [vmem:[#allocation11 + $0x490] sm:$0xff]
    %v1173 = vld [vmem:[#allocation11 + $0x498] sm:$0xff]
    %v1174 = vld [vmem:[#allocation11 + $0x4a0] sm:$0xff]
    %v1175 = vld [vmem:[#allocation11 + $0x4a8] sm:$0xff]
    %v1176 = vld [vmem:[#allocation11 + $0x4b0] sm:$0xff]
    %v1177 = vld [vmem:[#allocation11 + $0x4b8] sm:$0xff]
    %v1178 = vld [vmem:[#allocation11 + $0x4c0] sm:$0xff]
    %v1179 = vld [vmem:[#allocation11 + $0x4c8] sm:$0xff]
    %v1180 = vld [vmem:[#allocation11 + $0x4d0] sm:$0xff]
    %v1181 = vld [vmem:[#allocation11 + $0x4d8] sm:$0xff]
    %v1182 = vld [vmem:[#allocation11 + $0x4e0] sm:$0xff]
    %v1183 = vld [vmem:[#allocation11 + $0x4e8] sm:$0xff]
    %v1184 = vld [vmem:[#allocation11 + $0x4f0] sm:$0xff]
    %v1185 = vld [vmem:[#allocation11 + $0x4f8] sm:$0xff]
    %v1186 = vld [vmem:[#allocation11 + $0x500] sm:$0xff]
    %v1187 = vld [vmem:[#allocation11 + $0x508] sm:$0xff]
    %v1188 = vld [vmem:[#allocation11 + $0x510] sm:$0xff]
    %v1189 = vld [vmem:[#allocation11 + $0x518] sm:$0xff]
    %v1190 = vld [vmem:[#allocation11 + $0x520] sm:$0xff]
    %v1191 = vld [vmem:[#allocation11 + $0x528] sm:$0xff]
    %v1192 = vld [vmem:[#allocation11 + $0x530] sm:$0xff]
    %v1193 = vld [vmem:[#allocation11 + $0x538] sm:$0xff]
    %v1194 = vld [vmem:[#allocation11 + $0x540] sm:$0xff]
    %v1195 = vld [vmem:[#allocation11 + $0x548] sm:$0xff]
    %v1196 = vld [vmem:[#allocation11 + $0x550] sm:$0xff]
    %v1197 = vld [vmem:[#allocation11 + $0x558] sm:$0xff]
    %v1198 = vld [vmem:[#allocation11 + $0x560] sm:$0xff]
    %v1199 = vld [vmem:[#allocation11 + $0x568] sm:$0xff]
    %v1200 = vld [vmem:[#allocation11 + $0x570] sm:$0xff]
    %v1201 = vld [vmem:[#allocation11 + $0x578] sm:$0xff]
    %v1202 = vld [vmem:[#allocation11 + $0x580] sm:$0xff]
    %v1203 = vld [vmem:[#allocation11 + $0x588] sm:$0xff]
    %v1204 = vld [vmem:[#allocation11 + $0x590] sm:$0xff]
    %v1205 = vld [vmem:[#allocation11 + $0x598] sm:$0xff]
    %v1206 = vld [vmem:[#allocation11 + $0x5a0] sm:$0xff]
    %v1207 = vld [vmem:[#allocation11 + $0x5a8] sm:$0xff]
    %v1208 = vld [vmem:[#allocation11 + $0x5b0] sm:$0xff]
    %v1209 = vld [vmem:[#allocation11 + $0x5b8] sm:$0xff]
    %v1210 = vld [vmem:[#allocation11 + $0x5c0] sm:$0xff]
    %v1211 = vld [vmem:[#allocation11 + $0x5c8] sm:$0xff]
    %v1212 = vld [vmem:[#allocation11 + $0x5d0] sm:$0xff]
    %v1213 = vld [vmem:[#allocation11 + $0x5d8] sm:$0xff]
    %v1214 = vld [vmem:[#allocation11 + $0x5e0] sm:$0xff]
    %v1215 = vld [vmem:[#allocation11 + $0x5e8] sm:$0xff]
    %v1216 = vld [vmem:[#allocation11 + $0x5f0] sm:$0xff]
    %v1217 = vld [vmem:[#allocation11 + $0x5f8] sm:$0xff]
    %v1218 = vld [vmem:[#allocation11 + $0x600] sm:$0xff]
    %v1219 = vld [vmem:[#allocation11 + $0x608] sm:$0xff]
    %v1220 = vld [vmem:[#allocation11 + $0x610] sm:$0xff]
    %v1221 = vld [vmem:[#allocation11 + $0x618] sm:$0xff]
    %v1222 = vld [vmem:[#allocation11 + $0x620] sm:$0xff]
    %v1223 = vld [vmem:[#allocation11 + $0x628] sm:$0xff]
    %v1224 = vld [vmem:[#allocation11 + $0x630] sm:$0xff]
    %v1225 = vld [vmem:[#allocation11 + $0x638] sm:$0xff]
    %v1226 = vld [vmem:[#allocation11 + $0x640] sm:$0xff]
    %v1227 = vld [vmem:[#allocation11 + $0x648] sm:$0xff]
    %v1228 = vld [vmem:[#allocation11 + $0x650] sm:$0xff]
    %v1229 = vld [vmem:[#allocation11 + $0x658] sm:$0xff]
    %v1230 = vld [vmem:[#allocation11 + $0x660] sm:$0xff]
    %v1231 = vld [vmem:[#allocation11 + $0x668] sm:$0xff]
    %v1232 = vld [vmem:[#allocation11 + $0x670] sm:$0xff]
    %v1233 = vld [vmem:[#allocation11 + $0x678] sm:$0xff]
    %v1234 = vld [vmem:[#allocation11 + $0x680] sm:$0xff]
    %v1235 = vld [vmem:[#allocation11 + $0x688] sm:$0xff]
    %v1236 = vld [vmem:[#allocation11 + $0x690] sm:$0xff]
    %v1237 = vld [vmem:[#allocation11 + $0x698] sm:$0xff]
    %v1238 = vld [vmem:[#allocation11 + $0x6a0] sm:$0xff]
    %v1239 = vld [vmem:[#allocation11 + $0x6a8] sm:$0xff]
    %v1240 = vld [vmem:[#allocation11 + $0x6b0] sm:$0xff]
    %v1241 = vld [vmem:[#allocation11 + $0x6b8] sm:$0xff]
    %v1242 = vld [vmem:[#allocation11 + $0x6c0] sm:$0xff]
    %v1243 = vld [vmem:[#allocation11 + $0x6c8] sm:$0xff]
    %v1244 = vld [vmem:[#allocation11 + $0x6d0] sm:$0xff]
    %v1245 = vld [vmem:[#allocation11 + $0x6d8] sm:$0xff]
    %v1246 = vld [vmem:[#allocation11 + $0x6e0] sm:$0xff]
    %v1247 = vld [vmem:[#allocation11 + $0x6e8] sm:$0xff]
    %v1248 = vld [vmem:[#allocation11 + $0x6f0] sm:$0xff]
    %v1249 = vld [vmem:[#allocation11 + $0x6f8] sm:$0xff]
    %v1250 = vld [vmem:[#allocation11 + $0x700] sm:$0xff]
    %v1251 = vld [vmem:[#allocation11 + $0x708] sm:$0xff]
    %v1252 = vld [vmem:[#allocation11 + $0x710] sm:$0xff]
    %v1253 = vld [vmem:[#allocation11 + $0x718] sm:$0xff]
    %v1254 = vld [vmem:[#allocation11 + $0x720] sm:$0xff]
    %v1255 = vld [vmem:[#allocation11 + $0x728] sm:$0xff]
    %v1256 = vld [vmem:[#allocation11 + $0x730] sm:$0xff]
    %v1257 = vld [vmem:[#allocation11 + $0x738] sm:$0xff]
    %v1258 = vld [vmem:[#allocation11 + $0x740] sm:$0xff]
    %v1259 = vld [vmem:[#allocation11 + $0x748] sm:$0xff]
    %v1260 = vld [vmem:[#allocation11 + $0x750] sm:$0xff]
    %v1261 = vld [vmem:[#allocation11 + $0x758] sm:$0xff]
    %v1262 = vld [vmem:[#allocation11 + $0x760] sm:$0xff]
    %v1263 = vld [vmem:[#allocation11 + $0x768] sm:$0xff]
    %v1264 = vld [vmem:[#allocation11 + $0x770] sm:$0xff]
    %v1265 = vld [vmem:[#allocation11 + $0x778] sm:$0xff]
    %v1266 = vld [vmem:[#allocation11 + $0x780] sm:$0xff]
    %v1267 = vld [vmem:[#allocation11 + $0x788] sm:$0xff]
    %v1268 = vld [vmem:[#allocation11 + $0x790] sm:$0xff]
    %v1269 = vld [vmem:[#allocation11 + $0x798] sm:$0xff]
    %v1270 = vld [vmem:[#allocation11 + $0x7a0] sm:$0xff]
    %v1271 = vld [vmem:[#allocation11 + $0x7a8] sm:$0xff]
    %v1272 = vld [vmem:[#allocation11 + $0x7b0] sm:$0xff]
    %v1273 = vld [vmem:[#allocation11 + $0x7b8] sm:$0xff]
    %v1274 = vld [vmem:[#allocation11 + $0x7c0] sm:$0xff]
    %v1275 = vld [vmem:[#allocation11 + $0x7c8] sm:$0xff]
    %v1276 = vld [vmem:[#allocation11 + $0x7d0] sm:$0xff]
    %v1277 = vld [vmem:[#allocation11 + $0x7d8] sm:$0xff]
    %v1278 = vld [vmem:[#allocation11 + $0x7e0] sm:$0xff]
    %v1279 = vld [vmem:[#allocation11 + $0x7e8] sm:$0xff]
    %v1280 = vld [vmem:[#allocation11 + $0x7f0] sm:$0xff]
    %v1281 = vld [vmem:[#allocation11 + $0x7f8] sm:$0xff]
    %1282 = vmatpush.msra.mxu0 %v1146
    %1283 = vmatpush.msra.mxu0 %v1138
    %1284 = vmatpush.msra.mxu0 %v1130
    %1285 = vmatpush.msra.mxu0 %v1122
    %1286 = vmatpush.msra.mxu0 %v1114
    %1287 = vmatpush.msra.mxu0 %v1106
    %1288 = vmatpush.msra.mxu0 %v1098
    %1289 = vmatpush.msra.mxu0 %v1090
    %1290 = vmatpush.msra.mxu0 %v1082
    %1291 = vmatpush.msra.mxu0 %v1074
    %1292 = vmatpush.msra.mxu0 %v1066
    %1293 = vmatpush.msra.mxu0 %v1058
    %1294 = vmatpush.msra.mxu0 %v1050
    %1295 = vmatpush.msra.mxu0 %v1042
    %1296 = vmatpush.msra.mxu0 %v1034
    %1297 = vmatpush.msra.mxu0 %v1026
    %1298 = vmatmul.f32.gmra.mxu0 %v1022
    %v1299 = vpop.f32.mrf.mxu0
    %v1300 = vadd.f32 0.0, %v1299
    %1301 = vmatmul.f32.gmra.mxu0 %v1024
    %v1302 = vpop.f32.mrf.mxu0
    %v1303 = vadd.f32 0.0, %v1302
    %1304 = vdwg.mxu0
    %1305 = vmatpush.msra.mxu0 %v1274
    %1306 = vmatpush.msra.mxu0 %v1266
    %1307 = vmatpush.msra.mxu0 %v1258
    %1308 = vmatpush.msra.mxu0 %v1250
    %1309 = vmatpush.msra.mxu0 %v1242
    %1310 = vmatpush.msra.mxu0 %v1234
    %1311 = vmatpush.msra.mxu0 %v1226
    %1312 = vmatpush.msra.mxu0 %v1218
    %1313 = vmatpush.msra.mxu0 %v1210
    %1314 = vmatpush.msra.mxu0 %v1202
    %1315 = vmatpush.msra.mxu0 %v1194
    %1316 = vmatpush.msra.mxu0 %v1186
    %1317 = vmatpush.msra.mxu0 %v1178
    %1318 = vmatpush.msra.mxu0 %v1170
    %1319 = vmatpush.msra.mxu0 %v1162
    %1320 = vmatpush.msra.mxu0 %v1154
    %1321 = vmatmul.f32.gmra.mxu0 %v1023
    %v1322 = vpop.f32.mrf.mxu0
    %v1323 = vadd.f32 %v1300, %v1322
    %1324 = vmatmul.f32.gmra.mxu0 %v1025
    %v1325 = vpop.f32.mrf.mxu0
    %v1326 = vadd.f32 %v1303, %v1325
    %1327 = vdwg.mxu0
    %1328 = vmatpush.msra.mxu0 %v1147
    %1329 = vmatpush.msra.mxu0 %v1139
    %1330 = vmatpush.msra.mxu0 %v1131
    %1331 = vmatpush.msra.mxu0 %v1123
    %1332 = vmatpush.msra.mxu0 %v1115
    %1333 = vmatpush.msra.mxu0 %v1107
    %1334 = vmatpush.msra.mxu0 %v1099
    %1335 = vmatpush.msra.mxu0 %v1091
    %1336 = vmatpush.msra.mxu0 %v1083
    %1337 = vmatpush.msra.mxu0 %v1075
    %1338 = vmatpush.msra.mxu0 %v1067
    %1339 = vmatpush.msra.mxu0 %v1059
    %1340 = vmatpush.msra.mxu0 %v1051
    %1341 = vmatpush.msra.mxu0 %v1043
    %1342 = vmatpush.msra.mxu0 %v1035
    %1343 = vmatpush.msra.mxu0 %v1027
    %1344 = vmatmul.f32.gmra.mxu0 %v1022
    %v1345 = vpop.f32.mrf.mxu0
    %v1346 = vadd.f32 0.0, %v1345
    %1347 = vmatmul.f32.gmra.mxu0 %v1024
    %v1348 = vpop.f32.mrf.mxu0
    %v1349 = vadd.f32 0.0, %v1348
    %1350 = vdwg.mxu0
    %1351 = vmatpush.msra.mxu0 %v1275
    %1352 = vmatpush.msra.mxu0 %v1267
    %1353 = vmatpush.msra.mxu0 %v1259
    %1354 = vmatpush.msra.mxu0 %v1251
    %1355 = vmatpush.msra.mxu0 %v1243
    %1356 = vmatpush.msra.mxu0 %v1235
    %1357 = vmatpush.msra.mxu0 %v1227
    %1358 = vmatpush.msra.mxu0 %v1219
    %1359 = vmatpush.msra.mxu0 %v1211
    %1360 = vmatpush.msra.mxu0 %v1203
    %1361 = vmatpush.msra.mxu0 %v1195
    %1362 = vmatpush.msra.mxu0 %v1187
    %1363 = vmatpush.msra.mxu0 %v1179
    %1364 = vmatpush.msra.mxu0 %v1171
    %1365 = vmatpush.msra.mxu0 %v1163
    %1366 = vmatpush.msra.mxu0 %v1155
    %1367 = vmatmul.f32.gmra.mxu0 %v1023
    %v1368 = vpop.f32.mrf.mxu0
    %v1369 = vadd.f32 %v1346, %v1368
    %1370 = vmatmul.f32.gmra.mxu0 %v1025
    %v1371 = vpop.f32.mrf.mxu0
    %v1372 = vadd.f32 %v1349, %v1371
    %1373 = vdwg.mxu0
    %1374 = vmatpush.msra.mxu0 %v1148
    %1375 = vmatpush.msra.mxu0 %v1140
    %1376 = vmatpush.msra.mxu0 %v1132
    %1377 = vmatpush.msra.mxu0 %v1124
    %1378 = vmatpush.msra.mxu0 %v1116
    %1379 = vmatpush.msra.mxu0 %v1108
    %1380 = vmatpush.msra.mxu0 %v1100
    %1381 = vmatpush.msra.mxu0 %v1092
    %1382 = vmatpush.msra.mxu0 %v1084
    %1383 = vmatpush.msra.mxu0 %v1076
    %1384 = vmatpush.msra.mxu0 %v1068
    %1385 = vmatpush.msra.mxu0 %v1060
    %1386 = vmatpush.msra.mxu0 %v1052
    %1387 = vmatpush.msra.mxu0 %v1044
    %1388 = vmatpush.msra.mxu0 %v1036
    %1389 = vmatpush.msra.mxu0 %v1028
    %1390 = vmatmul.f32.gmra.mxu0 %v1022
    %v1391 = vpop.f32.mrf.mxu0
    %v1392 = vadd.f32 0.0, %v1391
    %1393 = vmatmul.f32.gmra.mxu0 %v1024
    %v1394 = vpop.f32.mrf.mxu0
    %v1395 = vadd.f32 0.0, %v1394
    %1396 = vdwg.mxu0
    %1397 = vmatpush.msra.mxu0 %v1276
    %1398 = vmatpush.msra.mxu0 %v1268
    %1399 = vmatpush.msra.mxu0 %v1260
    %1400 = vmatpush.msra.mxu0 %v1252
    %1401 = vmatpush.msra.mxu0 %v1244
    %1402 = vmatpush.msra.mxu0 %v1236
    %1403 = vmatpush.msra.mxu0 %v1228
    %1404 = vmatpush.msra.mxu0 %v1220
    %1405 = vmatpush.msra.mxu0 %v1212
    %1406 = vmatpush.msra.mxu0 %v1204
    %1407 = vmatpush.msra.mxu0 %v1196
    %1408 = vmatpush.msra.mxu0 %v1188
    %1409 = vmatpush.msra.mxu0 %v1180
    %1410 = vmatpush.msra.mxu0 %v1172
    %1411 = vmatpush.msra.mxu0 %v1164
    %1412 = vmatpush.msra.mxu0 %v1156
    %1413 = vmatmul.f32.gmra.mxu0 %v1023
    %v1414 = vpop.f32.mrf.mxu0
    %v1415 = vadd.f32 %v1392, %v1414
    %1416 = vmatmul.f32.gmra.mxu0 %v1025
    %v1417 = vpop.f32.mrf.mxu0
    %v1418 = vadd.f32 %v1395, %v1417
    %1419 = vdwg.mxu0
    %1420 = vmatpush.msra.mxu0 %v1149
    %1421 = vmatpush.msra.mxu0 %v1141
    %1422 = vmatpush.msra.mxu0 %v1133
    %1423 = vmatpush.msra.mxu0 %v1125
    %1424 = vmatpush.msra.mxu0 %v1117
    %1425 = vmatpush.msra.mxu0 %v1109
    %1426 = vmatpush.msra.mxu0 %v1101
    %1427 = vmatpush.msra.mxu0 %v1093
    %1428 = vmatpush.msra.mxu0 %v1085
    %1429 = vmatpush.msra.mxu0 %v1077
    %1430 = vmatpush.msra.mxu0 %v1069
    %1431 = vmatpush.msra.mxu0 %v1061
    %1432 = vmatpush.msra.mxu0 %v1053
    %1433 = vmatpush.msra.mxu0 %v1045
    %1434 = vmatpush.msra.mxu0 %v1037
    %1435 = vmatpush.msra.mxu0 %v1029
    %1436 = vmatmul.f32.gmra.mxu0 %v1022
    %v1437 = vpop.f32.mrf.mxu0
    %v1438 = vadd.f32 0.0, %v1437
    %1439 = vmatmul.f32.gmra.mxu0 %v1024
    %v1440 = vpop.f32.mrf.mxu0
    %v1441 = vadd.f32 0.0, %v1440
    %1442 = vdwg.mxu0
    %1443 = vmatpush.msra.mxu0 %v1277
    %1444 = vmatpush.msra.mxu0 %v1269
    %1445 = vmatpush.msra.mxu0 %v1261
    %1446 = vmatpush.msra.mxu0 %v1253
    %1447 = vmatpush.msra.mxu0 %v1245
    %1448 = vmatpush.msra.mxu0 %v1237
    %1449 = vmatpush.msra.mxu0 %v1229
    %1450 = vmatpush.msra.mxu0 %v1221
    %1451 = vmatpush.msra.mxu0 %v1213
    %1452 = vmatpush.msra.mxu0 %v1205
    %1453 = vmatpush.msra.mxu0 %v1197
    %1454 = vmatpush.msra.mxu0 %v1189
    %1455 = vmatpush.msra.mxu0 %v1181
    %1456 = vmatpush.msra.mxu0 %v1173
    %1457 = vmatpush.msra.mxu0 %v1165
    %1458 = vmatpush.msra.mxu0 %v1157
    %1459 = vmatmul.f32.gmra.mxu0 %v1023
    %v1460 = vpop.f32.mrf.mxu0
    %v1461 = vadd.f32 %v1438, %v1460
    %1462 = vmatmul.f32.gmra.mxu0 %v1025
    %v1463 = vpop.f32.mrf.mxu0
    %v1464 = vadd.f32 %v1441, %v1463
    %1465 = vdwg.mxu0
    %1466 = vmatpush.msra.mxu0 %v1150
    %1467 = vmatpush.msra.mxu0 %v1142
    %1468 = vmatpush.msra.mxu0 %v1134
    %1469 = vmatpush.msra.mxu0 %v1126
    %1470 = vmatpush.msra.mxu0 %v1118
    %1471 = vmatpush.msra.mxu0 %v1110
    %1472 = vmatpush.msra.mxu0 %v1102
    %1473 = vmatpush.msra.mxu0 %v1094
    %1474 = vmatpush.msra.mxu0 %v1086
    %1475 = vmatpush.msra.mxu0 %v1078
    %1476 = vmatpush.msra.mxu0 %v1070
    %1477 = vmatpush.msra.mxu0 %v1062
    %1478 = vmatpush.msra.mxu0 %v1054
    %1479 = vmatpush.msra.mxu0 %v1046
    %1480 = vmatpush.msra.mxu0 %v1038
    %1481 = vmatpush.msra.mxu0 %v1030
    %1482 = vmatmul.f32.gmra.mxu0 %v1022
    %v1483 = vpop.f32.mrf.mxu0
    %v1484 = vadd.f32 0.0, %v1483
    %1485 = vmatmul.f32.gmra.mxu0 %v1024
    %v1486 = vpop.f32.mrf.mxu0
    %v1487 = vadd.f32 0.0, %v1486
    %1488 = vdwg.mxu0
    %1489 = vmatpush.msra.mxu0 %v1278
    %1490 = vmatpush.msra.mxu0 %v1270
    %1491 = vmatpush.msra.mxu0 %v1262
    %1492 = vmatpush.msra.mxu0 %v1254
    %1493 = vmatpush.msra.mxu0 %v1246
    %1494 = vmatpush.msra.mxu0 %v1238
    %1495 = vmatpush.msra.mxu0 %v1230
    %1496 = vmatpush.msra.mxu0 %v1222
    %1497 = vmatpush.msra.mxu0 %v1214
    %1498 = vmatpush.msra.mxu0 %v1206
    %1499 = vmatpush.msra.mxu0 %v1198
    %1500 = vmatpush.msra.mxu0 %v1190
    %1501 = vmatpush.msra.mxu0 %v1182
    %1502 = vmatpush.msra.mxu0 %v1174
    %1503 = vmatpush.msra.mxu0 %v1166
    %1504 = vmatpush.msra.mxu0 %v1158
    %1505 = vmatmul.f32.gmra.mxu0 %v1023
    %v1506 = vpop.f32.mrf.mxu0
    %v1507 = vadd.f32 %v1484, %v1506
    %1508 = vmatmul.f32.gmra.mxu0 %v1025
    %v1509 = vpop.f32.mrf.mxu0
    %v1510 = vadd.f32 %v1487, %v1509
    %1511 = vdwg.mxu0
    %1512 = vmatpush.msra.mxu0 %v1151
    %1513 = vmatpush.msra.mxu0 %v1143
    %1514 = vmatpush.msra.mxu0 %v1135
    %1515 = vmatpush.msra.mxu0 %v1127
    %1516 = vmatpush.msra.mxu0 %v1119
    %1517 = vmatpush.msra.mxu0 %v1111
    %1518 = vmatpush.msra.mxu0 %v1103
    %1519 = vmatpush.msra.mxu0 %v1095
    %1520 = vmatpush.msra.mxu0 %v1087
    %1521 = vmatpush.msra.mxu0 %v1079
    %1522 = vmatpush.msra.mxu0 %v1071
    %1523 = vmatpush.msra.mxu0 %v1063
    %1524 = vmatpush.msra.mxu0 %v1055
    %1525 = vmatpush.msra.mxu0 %v1047
    %1526 = vmatpush.msra.mxu0 %v1039
    %1527 = vmatpush.msra.mxu0 %v1031
    %1528 = vmatmul.f32.gmra.mxu0 %v1022
    %v1529 = vpop.f32.mrf.mxu0
    %v1530 = vadd.f32 0.0, %v1529
    %1531 = vmatmul.f32.gmra.mxu0 %v1024
    %v1532 = vpop.f32.mrf.mxu0
    %v1533 = vadd.f32 0.0, %v1532
    %1534 = vdwg.mxu0
    %1535 = vmatpush.msra.mxu0 %v1279
    %1536 = vmatpush.msra.mxu0 %v1271
    %1537 = vmatpush.msra.mxu0 %v1263
    %1538 = vmatpush.msra.mxu0 %v1255
    %1539 = vmatpush.msra.mxu0 %v1247
    %1540 = vmatpush.msra.mxu0 %v1239
    %1541 = vmatpush.msra.mxu0 %v1231
    %1542 = vmatpush.msra.mxu0 %v1223
    %1543 = vmatpush.msra.mxu0 %v1215
    %1544 = vmatpush.msra.mxu0 %v1207
    %1545 = vmatpush.msra.mxu0 %v1199
    %1546 = vmatpush.msra.mxu0 %v1191
    %1547 = vmatpush.msra.mxu0 %v1183
    %1548 = vmatpush.msra.mxu0 %v1175
    %1549 = vmatpush.msra.mxu0 %v1167
    %1550 = vmatpush.msra.mxu0 %v1159
    %1551 = vmatmul.f32.gmra.mxu0 %v1023
    %v1552 = vpop.f32.mrf.mxu0
    %v1553 = vadd.f32 %v1530, %v1552
    %1554 = vmatmul.f32.gmra.mxu0 %v1025
    %v1555 = vpop.f32.mrf.mxu0
    %v1556 = vadd.f32 %v1533, %v1555
    %1557 = vdwg.mxu0
    %1558 = vmatpush.msra.mxu0 %v1152
    %1559 = vmatpush.msra.mxu0 %v1144
    %1560 = vmatpush.msra.mxu0 %v1136
    %1561 = vmatpush.msra.mxu0 %v1128
    %1562 = vmatpush.msra.mxu0 %v1120
    %1563 = vmatpush.msra.mxu0 %v1112
    %1564 = vmatpush.msra.mxu0 %v1104
    %1565 = vmatpush.msra.mxu0 %v1096
    %1566 = vmatpush.msra.mxu0 %v1088
    %1567 = vmatpush.msra.mxu0 %v1080
    %1568 = vmatpush.msra.mxu0 %v1072
    %1569 = vmatpush.msra.mxu0 %v1064
    %1570 = vmatpush.msra.mxu0 %v1056
    %1571 = vmatpush.msra.mxu0 %v1048
    %1572 = vmatpush.msra.mxu0 %v1040
    %1573 = vmatpush.msra.mxu0 %v1032
    %1574 = vmatmul.f32.gmra.mxu0 %v1022
    %v1575 = vpop.f32.mrf.mxu0
    %v1576 = vadd.f32 0.0, %v1575
    %1577 = vmatmul.f32.gmra.mxu0 %v1024
    %v1578 = vpop.f32.mrf.mxu0
    %v1579 = vadd.f32 0.0, %v1578
    %1580 = vdwg.mxu0
    %1581 = vmatpush.msra.mxu0 %v1280
    %1582 = vmatpush.msra.mxu0 %v1272
    %1583 = vmatpush.msra.mxu0 %v1264
    %1584 = vmatpush.msra.mxu0 %v1256
    %1585 = vmatpush.msra.mxu0 %v1248
    %1586 = vmatpush.msra.mxu0 %v1240
    %1587 = vmatpush.msra.mxu0 %v1232
    %1588 = vmatpush.msra.mxu0 %v1224
    %1589 = vmatpush.msra.mxu0 %v1216
    %1590 = vmatpush.msra.mxu0 %v1208
    %1591 = vmatpush.msra.mxu0 %v1200
    %1592 = vmatpush.msra.mxu0 %v1192
    %1593 = vmatpush.msra.mxu0 %v1184
    %1594 = vmatpush.msra.mxu0 %v1176
    %1595 = vmatpush.msra.mxu0 %v1168
    %1596 = vmatpush.msra.mxu0 %v1160
    %1597 = vmatmul.f32.gmra.mxu0 %v1023
    %v1598 = vpop.f32.mrf.mxu0
    %v1599 = vadd.f32 %v1576, %v1598
    %1600 = vmatmul.f32.gmra.mxu0 %v1025
    %v1601 = vpop.f32.mrf.mxu0
    %v1602 = vadd.f32 %v1579, %v1601
    %1603 = vdwg.mxu0
    %1604 = vmatpush.msra.mxu0 %v1153
    %1605 = vmatpush.msra.mxu0 %v1145
    %1606 = vmatpush.msra.mxu0 %v1137
    %1607 = vmatpush.msra.mxu0 %v1129
    %1608 = vmatpush.msra.mxu0 %v1121
    %1609 = vmatpush.msra.mxu0 %v1113
    %1610 = vmatpush.msra.mxu0 %v1105
    %1611 = vmatpush.msra.mxu0 %v1097
    %1612 = vmatpush.msra.mxu0 %v1089
    %1613 = vmatpush.msra.mxu0 %v1081
    %1614 = vmatpush.msra.mxu0 %v1073
    %1615 = vmatpush.msra.mxu0 %v1065
    %1616 = vmatpush.msra.mxu0 %v1057
    %1617 = vmatpush.msra.mxu0 %v1049
    %1618 = vmatpush.msra.mxu0 %v1041
    %1619 = vmatpush.msra.mxu0 %v1033
    %1620 = vmatmul.f32.gmra.mxu0 %v1022
    %v1621 = vpop.f32.mrf.mxu0
    %v1622 = vadd.f32 0.0, %v1621
    %1623 = vmatmul.f32.gmra.mxu0 %v1024
    %v1624 = vpop.f32.mrf.mxu0
    %v1625 = vadd.f32 0.0, %v1624
    %1626 = vdwg.mxu0
    %1627 = vmatpush.msra.mxu0 %v1281
    %1628 = vmatpush.msra.mxu0 %v1273
    %1629 = vmatpush.msra.mxu0 %v1265
    %1630 = vmatpush.msra.mxu0 %v1257
    %1631 = vmatpush.msra.mxu0 %v1249
    %1632 = vmatpush.msra.mxu0 %v1241
    %1633 = vmatpush.msra.mxu0 %v1233
    %1634 = vmatpush.msra.mxu0 %v1225
    %1635 = vmatpush.msra.mxu0 %v1217
    %1636 = vmatpush.msra.mxu0 %v1209
    %1637 = vmatpush.msra.mxu0 %v1201
    %1638 = vmatpush.msra.mxu0 %v1193
    %1639 = vmatpush.msra.mxu0 %v1185
    %1640 = vmatpush.msra.mxu0 %v1177
    %1641 = vmatpush.msra.mxu0 %v1169
    %1642 = vmatpush.msra.mxu0 %v1161
    %1643 = vmatmul.f32.gmra.mxu0 %v1023
    %v1644 = vpop.f32.mrf.mxu0
    %v1645 = vadd.f32 %v1622, %v1644
    %1646 = vmatmul.f32.gmra.mxu0 %v1025
    %v1647 = vpop.f32.mrf.mxu0
    %v1648 = vadd.f32 %v1625, %v1647
    %1649 = vdwg.mxu0
    %v1650 = vxor.u32 %v1323, 2147483648
    %v1651 = vxor.u32 %v1369, 2147483648
    %v1652 = vxor.u32 %v1415, 2147483648
    %v1653 = vxor.u32 %v1461, 2147483648
    %v1654 = vxor.u32 %v1326, 2147483648
    %v1655 = vxor.u32 %v1372, 2147483648
    %v1656 = vxor.u32 %v1418, 2147483648
    %v1657 = vxor.u32 %v1464, 2147483648
    %v1658 = vmul.f32 %v1650, 1.442695
    %v1659 = vpow.pop %v1658
    %v1660 = vmul.f32 %v1651, 1.442695
    %v1661 = vpow.pop %v1660
    %v1662 = vmul.f32 %v1652, 1.442695
    %v1663 = vpow.pop %v1662
    %v1664 = vmul.f32 %v1653, 1.442695
    %v1665 = vpow.pop %v1664
    %v1666 = vmul.f32 %v1654, 1.442695
    %v1667 = vpow.pop %v1666
    %v1668 = vmul.f32 %v1655, 1.442695
    %v1669 = vpow.pop %v1668
    %v1670 = vmul.f32 %v1656, 1.442695
    %v1671 = vpow.pop %v1670
    %v1672 = vmul.f32 %v1657, 1.442695
    %v1673 = vpow.pop %v1672
    %v1674 = vadd.f32 %v1659, 1.0
    %v1675 = vadd.f32 %v1661, 1.0
    %v1676 = vadd.f32 %v1663, 1.0
    %v1677 = vadd.f32 %v1665, 1.0
    %v1678 = vadd.f32 %v1667, 1.0
    %v1679 = vadd.f32 %v1669, 1.0
    %v1680 = vadd.f32 %v1671, 1.0
    %v1681 = vadd.f32 %v1673, 1.0
    %v1682 = vrcp.pop %v1674
    %v1683 = vmul.f32 %v1674, %v1682
    %v1684 = vsub.f32 1.0, %v1683
    %v1685 = vmul.f32 %v1682, %v1684
    %v1686 = vadd.f32 %v1682, %v1685
    %vm1687 = vweird.f32 %v1674
    %vm1688 = vweird.f32 %v1682
    %vm1689 = vmor %vm1687, %vm1688
    %v1690 = vsel %vm1689, %v1682, %v1686
    %v1691 = vand.u32 2147483647, %v1674
    %vm1692 = vcmp.eq.f32.partialorder %v1691, 8.507059e+37
    %v1693 = vand.u32 %v1674, 2147483648
    %v1694 = vor.u32 1.1754944e-38, %v1693
    %v1695 = vsel %vm1692, %v1694, %v1690
    %v1696 = vmul.f32 1.0, %v1695
    %v1697 = vrcp.pop %v1675
    %v1698 = vmul.f32 %v1675, %v1697
    %v1699 = vsub.f32 1.0, %v1698
    %v1700 = vmul.f32 %v1697, %v1699
    %v1701 = vadd.f32 %v1697, %v1700
    %vm1702 = vweird.f32 %v1675
    %vm1703 = vweird.f32 %v1697
    %vm1704 = vmor %vm1702, %vm1703
    %v1705 = vsel %vm1704, %v1697, %v1701
    %v1706 = vand.u32 2147483647, %v1675
    %vm1707 = vcmp.eq.f32.partialorder %v1706, 8.507059e+37
    %v1708 = vand.u32 %v1675, 2147483648
    %v1709 = vor.u32 1.1754944e-38, %v1708
    %v1710 = vsel %vm1707, %v1709, %v1705
    %v1711 = vmul.f32 1.0, %v1710
    %v1712 = vrcp.pop %v1676
    %v1713 = vmul.f32 %v1676, %v1712
    %v1714 = vsub.f32 1.0, %v1713
    %v1715 = vmul.f32 %v1712, %v1714
    %v1716 = vadd.f32 %v1712, %v1715
    %vm1717 = vweird.f32 %v1676
    %vm1718 = vweird.f32 %v1712
    %vm1719 = vmor %vm1717, %vm1718
    %v1720 = vsel %vm1719, %v1712, %v1716
    %v1721 = vand.u32 2147483647, %v1676
    %vm1722 = vcmp.eq.f32.partialorder %v1721, 8.507059e+37
    %v1723 = vand.u32 %v1676, 2147483648
    %v1724 = vor.u32 1.1754944e-38, %v1723
    %v1725 = vsel %vm1722, %v1724, %v1720
    %v1726 = vmul.f32 1.0, %v1725
    %v1727 = vrcp.pop %v1677
    %v1728 = vmul.f32 %v1677, %v1727
    %v1729 = vsub.f32 1.0, %v1728
    %v1730 = vmul.f32 %v1727, %v1729
    %v1731 = vadd.f32 %v1727, %v1730
    %vm1732 = vweird.f32 %v1677
    %vm1733 = vweird.f32 %v1727
    %vm1734 = vmor %vm1732, %vm1733
    %v1735 = vsel %vm1734, %v1727, %v1731
    %v1736 = vand.u32 2147483647, %v1677
    %vm1737 = vcmp.eq.f32.partialorder %v1736, 8.507059e+37
    %v1738 = vand.u32 %v1677, 2147483648
    %v1739 = vor.u32 1.1754944e-38, %v1738
    %v1740 = vsel %vm1737, %v1739, %v1735
    %v1741 = vmul.f32 1.0, %v1740
    %v1742 = vrcp.pop %v1678
    %v1743 = vmul.f32 %v1678, %v1742
    %v1744 = vsub.f32 1.0, %v1743
    %v1745 = vmul.f32 %v1742, %v1744
    %v1746 = vadd.f32 %v1742, %v1745
    %vm1747 = vweird.f32 %v1678
    %vm1748 = vweird.f32 %v1742
    %vm1749 = vmor %vm1747, %vm1748
    %v1750 = vsel %vm1749, %v1742, %v1746
    %v1751 = vand.u32 2147483647, %v1678
    %vm1752 = vcmp.eq.f32.partialorder %v1751, 8.507059e+37
    %v1753 = vand.u32 %v1678, 2147483648
    %v1754 = vor.u32 1.1754944e-38, %v1753
    %v1755 = vsel %vm1752, %v1754, %v1750
    %v1756 = vmul.f32 1.0, %v1755
    %v1757 = vrcp.pop %v1679
    %v1758 = vmul.f32 %v1679, %v1757
    %v1759 = vsub.f32 1.0, %v1758
    %v1760 = vmul.f32 %v1757, %v1759
    %v1761 = vadd.f32 %v1757, %v1760
    %vm1762 = vweird.f32 %v1679
    %vm1763 = vweird.f32 %v1757
    %vm1764 = vmor %vm1762, %vm1763
    %v1765 = vsel %vm1764, %v1757, %v1761
    %v1766 = vand.u32 2147483647, %v1679
    %vm1767 = vcmp.eq.f32.partialorder %v1766, 8.507059e+37
    %v1768 = vand.u32 %v1679, 2147483648
    %v1769 = vor.u32 1.1754944e-38, %v1768
    %v1770 = vsel %vm1767, %v1769, %v1765
    %v1771 = vmul.f32 1.0, %v1770
    %v1772 = vrcp.pop %v1680
    %v1773 = vmul.f32 %v1680, %v1772
    %v1774 = vsub.f32 1.0, %v1773
    %v1775 = vmul.f32 %v1772, %v1774
    %v1776 = vadd.f32 %v1772, %v1775
    %vm1777 = vweird.f32 %v1680
    %vm1778 = vweird.f32 %v1772
    %vm1779 = vmor %vm1777, %vm1778
    %v1780 = vsel %vm1779, %v1772, %v1776
    %v1781 = vand.u32 2147483647, %v1680
    %vm1782 = vcmp.eq.f32.partialorder %v1781, 8.507059e+37
    %v1783 = vand.u32 %v1680, 2147483648
    %v1784 = vor.u32 1.1754944e-38, %v1783
    %v1785 = vsel %vm1782, %v1784, %v1780
    %v1786 = vmul.f32 1.0, %v1785
    %v1787 = vrcp.pop %v1681
    %v1788 = vmul.f32 %v1681, %v1787
    %v1789 = vsub.f32 1.0, %v1788
    %v1790 = vmul.f32 %v1787, %v1789
    %v1791 = vadd.f32 %v1787, %v1790
    %vm1792 = vweird.f32 %v1681
    %vm1793 = vweird.f32 %v1787
    %vm1794 = vmor %vm1792, %vm1793
    %v1795 = vsel %vm1794, %v1787, %v1791
    %v1796 = vand.u32 2147483647, %v1681
    %vm1797 = vcmp.eq.f32.partialorder %v1796, 8.507059e+37
    %v1798 = vand.u32 %v1681, 2147483648
    %v1799 = vor.u32 1.1754944e-38, %v1798
    %v1800 = vsel %vm1797, %v1799, %v1795
    %v1801 = vmul.f32 1.0, %v1800
    %v1802 = vmul.f32 %v1323, %v1696
    %v1803 = vmul.f32 %v1369, %v1711
    %v1804 = vmul.f32 %v1415, %v1726
    %v1805 = vmul.f32 %v1461, %v1741
    %v1806 = vmul.f32 %v1326, %v1756
    %v1807 = vmul.f32 %v1372, %v1771
    %v1808 = vmul.f32 %v1418, %v1786
    %v1809 = vmul.f32 %v1464, %v1801
    %v1810 = vmul.f32 %v1507, %v1802
    %v1811 = vmul.f32 %v1553, %v1803
    %v1812 = vmul.f32 %v1599, %v1804
    %v1813 = vmul.f32 %v1645, %v1805
    %v1814 = vmul.f32 %v1510, %v1806
    %v1815 = vmul.f32 %v1556, %v1807
    %v1816 = vmul.f32 %v1602, %v1808
    %v1817 = vmul.f32 %v1648, %v1809
    %v1818 = vld [vmem:[#allocation13] sm:$0xff]
    %v1819 = vld [vmem:[#allocation13 + $0x8] sm:$0xff]
    %v1820 = vld [vmem:[#allocation13 + $0x10] sm:$0xff]
    %v1821 = vld [vmem:[#allocation13 + $0x18] sm:$0xff]
    %v1822 = vld [vmem:[#allocation13 + $0x20] sm:$0xff]
    %v1823 = vld [vmem:[#allocation13 + $0x28] sm:$0xff]
    %v1824 = vld [vmem:[#allocation13 + $0x30] sm:$0xff]
    %v1825 = vld [vmem:[#allocation13 + $0x38] sm:$0xff]
    %v1826 = vld [vmem:[#allocation13 + $0x40] sm:$0xff]
    %v1827 = vld [vmem:[#allocation13 + $0x48] sm:$0xff]
    %v1828 = vld [vmem:[#allocation13 + $0x50] sm:$0xff]
    %v1829 = vld [vmem:[#allocation13 + $0x58] sm:$0xff]
    %v1830 = vld [vmem:[#allocation13 + $0x60] sm:$0xff]
    %v1831 = vld [vmem:[#allocation13 + $0x68] sm:$0xff]
    %v1832 = vld [vmem:[#allocation13 + $0x70] sm:$0xff]
    %v1833 = vld [vmem:[#allocation13 + $0x78] sm:$0xff]
    %v1834 = vld [vmem:[#allocation13 + $0x80] sm:$0xff]
    %v1835 = vld [vmem:[#allocation13 + $0x88] sm:$0xff]
    %v1836 = vld [vmem:[#allocation13 + $0x90] sm:$0xff]
    %v1837 = vld [vmem:[#allocation13 + $0x98] sm:$0xff]
    %v1838 = vld [vmem:[#allocation13 + $0xa0] sm:$0xff]
    %v1839 = vld [vmem:[#allocation13 + $0xa8] sm:$0xff]
    %v1840 = vld [vmem:[#allocation13 + $0xb0] sm:$0xff]
    %v1841 = vld [vmem:[#allocation13 + $0xb8] sm:$0xff]
    %v1842 = vld [vmem:[#allocation13 + $0xc0] sm:$0xff]
    %v1843 = vld [vmem:[#allocation13 + $0xc8] sm:$0xff]
    %v1844 = vld [vmem:[#allocation13 + $0xd0] sm:$0xff]
    %v1845 = vld [vmem:[#allocation13 + $0xd8] sm:$0xff]
    %v1846 = vld [vmem:[#allocation13 + $0xe0] sm:$0xff]
    %v1847 = vld [vmem:[#allocation13 + $0xe8] sm:$0xff]
    %v1848 = vld [vmem:[#allocation13 + $0xf0] sm:$0xff]
    %v1849 = vld [vmem:[#allocation13 + $0xf8] sm:$0xff]
    %v1850 = vld [vmem:[#allocation13 + $0x100] sm:$0xff]
    %v1851 = vld [vmem:[#allocation13 + $0x108] sm:$0xff]
    %v1852 = vld [vmem:[#allocation13 + $0x110] sm:$0xff]
    %v1853 = vld [vmem:[#allocation13 + $0x118] sm:$0xff]
    %v1854 = vld [vmem:[#allocation13 + $0x120] sm:$0xff]
    %v1855 = vld [vmem:[#allocation13 + $0x128] sm:$0xff]
    %v1856 = vld [vmem:[#allocation13 + $0x130] sm:$0xff]
    %v1857 = vld [vmem:[#allocation13 + $0x138] sm:$0xff]
    %v1858 = vld [vmem:[#allocation13 + $0x140] sm:$0xff]
    %v1859 = vld [vmem:[#allocation13 + $0x148] sm:$0xff]
    %v1860 = vld [vmem:[#allocation13 + $0x150] sm:$0xff]
    %v1861 = vld [vmem:[#allocation13 + $0x158] sm:$0xff]
    %v1862 = vld [vmem:[#allocation13 + $0x160] sm:$0xff]
    %v1863 = vld [vmem:[#allocation13 + $0x168] sm:$0xff]
    %v1864 = vld [vmem:[#allocation13 + $0x170] sm:$0xff]
    %v1865 = vld [vmem:[#allocation13 + $0x178] sm:$0xff]
    %v1866 = vld [vmem:[#allocation13 + $0x180] sm:$0xff]
    %v1867 = vld [vmem:[#allocation13 + $0x188] sm:$0xff]
    %v1868 = vld [vmem:[#allocation13 + $0x190] sm:$0xff]
    %v1869 = vld [vmem:[#allocation13 + $0x198] sm:$0xff]
    %v1870 = vld [vmem:[#allocation13 + $0x1a0] sm:$0xff]
    %v1871 = vld [vmem:[#allocation13 + $0x1a8] sm:$0xff]
    %v1872 = vld [vmem:[#allocation13 + $0x1b0] sm:$0xff]
    %v1873 = vld [vmem:[#allocation13 + $0x1b8] sm:$0xff]
    %v1874 = vld [vmem:[#allocation13 + $0x1c0] sm:$0xff]
    %v1875 = vld [vmem:[#allocation13 + $0x1c8] sm:$0xff]
    %v1876 = vld [vmem:[#allocation13 + $0x1d0] sm:$0xff]
    %v1877 = vld [vmem:[#allocation13 + $0x1d8] sm:$0xff]
    %v1878 = vld [vmem:[#allocation13 + $0x1e0] sm:$0xff]
    %v1879 = vld [vmem:[#allocation13 + $0x1e8] sm:$0xff]
    %v1880 = vld [vmem:[#allocation13 + $0x1f0] sm:$0xff]
    %v1881 = vld [vmem:[#allocation13 + $0x1f8] sm:$0xff]
    %v1882 = vld [vmem:[#allocation13 + $0x200] sm:$0xff]
    %v1883 = vld [vmem:[#allocation13 + $0x208] sm:$0xff]
    %v1884 = vld [vmem:[#allocation13 + $0x210] sm:$0xff]
    %v1885 = vld [vmem:[#allocation13 + $0x218] sm:$0xff]
    %v1886 = vld [vmem:[#allocation13 + $0x220] sm:$0xff]
    %v1887 = vld [vmem:[#allocation13 + $0x228] sm:$0xff]
    %v1888 = vld [vmem:[#allocation13 + $0x230] sm:$0xff]
    %v1889 = vld [vmem:[#allocation13 + $0x238] sm:$0xff]
    %v1890 = vld [vmem:[#allocation13 + $0x240] sm:$0xff]
    %v1891 = vld [vmem:[#allocation13 + $0x248] sm:$0xff]
    %v1892 = vld [vmem:[#allocation13 + $0x250] sm:$0xff]
    %v1893 = vld [vmem:[#allocation13 + $0x258] sm:$0xff]
    %v1894 = vld [vmem:[#allocation13 + $0x260] sm:$0xff]
    %v1895 = vld [vmem:[#allocation13 + $0x268] sm:$0xff]
    %v1896 = vld [vmem:[#allocation13 + $0x270] sm:$0xff]
    %v1897 = vld [vmem:[#allocation13 + $0x278] sm:$0xff]
    %v1898 = vld [vmem:[#allocation13 + $0x280] sm:$0xff]
    %v1899 = vld [vmem:[#allocation13 + $0x288] sm:$0xff]
    %v1900 = vld [vmem:[#allocation13 + $0x290] sm:$0xff]
    %v1901 = vld [vmem:[#allocation13 + $0x298] sm:$0xff]
    %v1902 = vld [vmem:[#allocation13 + $0x2a0] sm:$0xff]
    %v1903 = vld [vmem:[#allocation13 + $0x2a8] sm:$0xff]
    %v1904 = vld [vmem:[#allocation13 + $0x2b0] sm:$0xff]
    %v1905 = vld [vmem:[#allocation13 + $0x2b8] sm:$0xff]
    %v1906 = vld [vmem:[#allocation13 + $0x2c0] sm:$0xff]
    %v1907 = vld [vmem:[#allocation13 + $0x2c8] sm:$0xff]
    %v1908 = vld [vmem:[#allocation13 + $0x2d0] sm:$0xff]
    %v1909 = vld [vmem:[#allocation13 + $0x2d8] sm:$0xff]
    %v1910 = vld [vmem:[#allocation13 + $0x2e0] sm:$0xff]
    %v1911 = vld [vmem:[#allocation13 + $0x2e8] sm:$0xff]
    %v1912 = vld [vmem:[#allocation13 + $0x2f0] sm:$0xff]
    %v1913 = vld [vmem:[#allocation13 + $0x2f8] sm:$0xff]
    %v1914 = vld [vmem:[#allocation13 + $0x300] sm:$0xff]
    %v1915 = vld [vmem:[#allocation13 + $0x308] sm:$0xff]
    %v1916 = vld [vmem:[#allocation13 + $0x310] sm:$0xff]
    %v1917 = vld [vmem:[#allocation13 + $0x318] sm:$0xff]
    %v1918 = vld [vmem:[#allocation13 + $0x320] sm:$0xff]
    %v1919 = vld [vmem:[#allocation13 + $0x328] sm:$0xff]
    %v1920 = vld [vmem:[#allocation13 + $0x330] sm:$0xff]
    %v1921 = vld [vmem:[#allocation13 + $0x338] sm:$0xff]
    %v1922 = vld [vmem:[#allocation13 + $0x340] sm:$0xff]
    %v1923 = vld [vmem:[#allocation13 + $0x348] sm:$0xff]
    %v1924 = vld [vmem:[#allocation13 + $0x350] sm:$0xff]
    %v1925 = vld [vmem:[#allocation13 + $0x358] sm:$0xff]
    %v1926 = vld [vmem:[#allocation13 + $0x360] sm:$0xff]
    %v1927 = vld [vmem:[#allocation13 + $0x368] sm:$0xff]
    %v1928 = vld [vmem:[#allocation13 + $0x370] sm:$0xff]
    %v1929 = vld [vmem:[#allocation13 + $0x378] sm:$0xff]
    %v1930 = vld [vmem:[#allocation13 + $0x380] sm:$0xff]
    %v1931 = vld [vmem:[#allocation13 + $0x388] sm:$0xff]
    %v1932 = vld [vmem:[#allocation13 + $0x390] sm:$0xff]
    %v1933 = vld [vmem:[#allocation13 + $0x398] sm:$0xff]
    %v1934 = vld [vmem:[#allocation13 + $0x3a0] sm:$0xff]
    %v1935 = vld [vmem:[#allocation13 + $0x3a8] sm:$0xff]
    %v1936 = vld [vmem:[#allocation13 + $0x3b0] sm:$0xff]
    %v1937 = vld [vmem:[#allocation13 + $0x3b8] sm:$0xff]
    %v1938 = vld [vmem:[#allocation13 + $0x3c0] sm:$0xff]
    %v1939 = vld [vmem:[#allocation13 + $0x3c8] sm:$0xff]
    %v1940 = vld [vmem:[#allocation13 + $0x3d0] sm:$0xff]
    %v1941 = vld [vmem:[#allocation13 + $0x3d8] sm:$0xff]
    %v1942 = vld [vmem:[#allocation13 + $0x3e0] sm:$0xff]
    %v1943 = vld [vmem:[#allocation13 + $0x3e8] sm:$0xff]
    %v1944 = vld [vmem:[#allocation13 + $0x3f0] sm:$0xff]
    %v1945 = vld [vmem:[#allocation13 + $0x3f8] sm:$0xff]
    %1946 = vmatpush.msra.mxu0 %v1848
    %1947 = vmatpush.msra.mxu0 %v1846
    %1948 = vmatpush.msra.mxu0 %v1844
    %1949 = vmatpush.msra.mxu0 %v1842
    %1950 = vmatpush.msra.mxu0 %v1840
    %1951 = vmatpush.msra.mxu0 %v1838
    %1952 = vmatpush.msra.mxu0 %v1836
    %1953 = vmatpush.msra.mxu0 %v1834
    %1954 = vmatpush.msra.mxu0 %v1832
    %1955 = vmatpush.msra.mxu0 %v1830
    %1956 = vmatpush.msra.mxu0 %v1828
    %1957 = vmatpush.msra.mxu0 %v1826
    %1958 = vmatpush.msra.mxu0 %v1824
    %1959 = vmatpush.msra.mxu0 %v1822
    %1960 = vmatpush.msra.mxu0 %v1820
    %1961 = vmatpush.msra.mxu0 %v1818
    %1962 = vmatmul.f32.gmra.mxu0 %v1810
    %v1963 = vpop.f32.mrf.mxu0
    %v1964 = vadd.f32 0.0, %v1963
    %1965 = vmatmul.f32.gmra.mxu0 %v1814
    %v1966 = vpop.f32.mrf.mxu0
    %v1967 = vadd.f32 0.0, %v1966
    %1968 = vdwg.mxu0
    %1969 = vmatpush.msra.mxu0 %v1880
    %1970 = vmatpush.msra.mxu0 %v1878
    %1971 = vmatpush.msra.mxu0 %v1876
    %1972 = vmatpush.msra.mxu0 %v1874
    %1973 = vmatpush.msra.mxu0 %v1872
    %1974 = vmatpush.msra.mxu0 %v1870
    %1975 = vmatpush.msra.mxu0 %v1868
    %1976 = vmatpush.msra.mxu0 %v1866
    %1977 = vmatpush.msra.mxu0 %v1864
    %1978 = vmatpush.msra.mxu0 %v1862
    %1979 = vmatpush.msra.mxu0 %v1860
    %1980 = vmatpush.msra.mxu0 %v1858
    %1981 = vmatpush.msra.mxu0 %v1856
    %1982 = vmatpush.msra.mxu0 %v1854
    %1983 = vmatpush.msra.mxu0 %v1852
    %1984 = vmatpush.msra.mxu0 %v1850
    %1985 = vmatmul.f32.gmra.mxu0 %v1811
    %v1986 = vpop.f32.mrf.mxu0
    %v1987 = vadd.f32 %v1964, %v1986
    %1988 = vmatmul.f32.gmra.mxu0 %v1815
    %v1989 = vpop.f32.mrf.mxu0
    %v1990 = vadd.f32 %v1967, %v1989
    %1991 = vdwg.mxu0
    %1992 = vmatpush.msra.mxu0 %v1912
    %1993 = vmatpush.msra.mxu0 %v1910
    %1994 = vmatpush.msra.mxu0 %v1908
    %1995 = vmatpush.msra.mxu0 %v1906
    %1996 = vmatpush.msra.mxu0 %v1904
    %1997 = vmatpush.msra.mxu0 %v1902
    %1998 = vmatpush.msra.mxu0 %v1900
    %1999 = vmatpush.msra.mxu0 %v1898
    %2000 = vmatpush.msra.mxu0 %v1896
    %2001 = vmatpush.msra.mxu0 %v1894
    %2002 = vmatpush.msra.mxu0 %v1892
    %2003 = vmatpush.msra.mxu0 %v1890
    %2004 = vmatpush.msra.mxu0 %v1888
    %2005 = vmatpush.msra.mxu0 %v1886
    %2006 = vmatpush.msra.mxu0 %v1884
    %2007 = vmatpush.msra.mxu0 %v1882
    %2008 = vmatmul.f32.gmra.mxu0 %v1812
    %v2009 = vpop.f32.mrf.mxu0
    %v2010 = vadd.f32 %v1987, %v2009
    %2011 = vmatmul.f32.gmra.mxu0 %v1816
    %v2012 = vpop.f32.mrf.mxu0
    %v2013 = vadd.f32 %v1990, %v2012
    %2014 = vdwg.mxu0
    %2015 = vmatpush.msra.mxu0 %v1944
    %2016 = vmatpush.msra.mxu0 %v1942
    %2017 = vmatpush.msra.mxu0 %v1940
    %2018 = vmatpush.msra.mxu0 %v1938
    %2019 = vmatpush.msra.mxu0 %v1936
    %2020 = vmatpush.msra.mxu0 %v1934
    %2021 = vmatpush.msra.mxu0 %v1932
    %2022 = vmatpush.msra.mxu0 %v1930
    %2023 = vmatpush.msra.mxu0 %v1928
    %2024 = vmatpush.msra.mxu0 %v1926
    %2025 = vmatpush.msra.mxu0 %v1924
    %2026 = vmatpush.msra.mxu0 %v1922
    %2027 = vmatpush.msra.mxu0 %v1920
    %2028 = vmatpush.msra.mxu0 %v1918
    %2029 = vmatpush.msra.mxu0 %v1916
    %2030 = vmatpush.msra.mxu0 %v1914
    %2031 = vmatmul.f32.gmra.mxu0 %v1813
    %v2032 = vpop.f32.mrf.mxu0
    %v2033 = vadd.f32 %v2010, %v2032
    %2034 = vmatmul.f32.gmra.mxu0 %v1817
    %v2035 = vpop.f32.mrf.mxu0
    %v2036 = vadd.f32 %v2013, %v2035
    %2037 = vdwg.mxu0
    %2038 = vmatpush.msra.mxu0 %v1849
    %2039 = vmatpush.msra.mxu0 %v1847
    %2040 = vmatpush.msra.mxu0 %v1845
    %2041 = vmatpush.msra.mxu0 %v1843
    %2042 = vmatpush.msra.mxu0 %v1841
    %2043 = vmatpush.msra.mxu0 %v1839
    %2044 = vmatpush.msra.mxu0 %v1837
    %2045 = vmatpush.msra.mxu0 %v1835
    %2046 = vmatpush.msra.mxu0 %v1833
    %2047 = vmatpush.msra.mxu0 %v1831
    %2048 = vmatpush.msra.mxu0 %v1829
    %2049 = vmatpush.msra.mxu0 %v1827
    %2050 = vmatpush.msra.mxu0 %v1825
    %2051 = vmatpush.msra.mxu0 %v1823
    %2052 = vmatpush.msra.mxu0 %v1821
    %2053 = vmatpush.msra.mxu0 %v1819
    %2054 = vmatmul.f32.gmra.mxu0 %v1810
    %v2055 = vpop.f32.mrf.mxu0
    %v2056 = vadd.f32 0.0, %v2055
    %2057 = vmatmul.f32.gmra.mxu0 %v1814
    %v2058 = vpop.f32.mrf.mxu0
    %v2059 = vadd.f32 0.0, %v2058
    %2060 = vdwg.mxu0
    %2061 = vmatpush.msra.mxu0 %v1881
    %2062 = vmatpush.msra.mxu0 %v1879
    %2063 = vmatpush.msra.mxu0 %v1877
    %2064 = vmatpush.msra.mxu0 %v1875
    %2065 = vmatpush.msra.mxu0 %v1873
    %2066 = vmatpush.msra.mxu0 %v1871
    %2067 = vmatpush.msra.mxu0 %v1869
    %2068 = vmatpush.msra.mxu0 %v1867
    %2069 = vmatpush.msra.mxu0 %v1865
    %2070 = vmatpush.msra.mxu0 %v1863
    %2071 = vmatpush.msra.mxu0 %v1861
    %2072 = vmatpush.msra.mxu0 %v1859
    %2073 = vmatpush.msra.mxu0 %v1857
    %2074 = vmatpush.msra.mxu0 %v1855
    %2075 = vmatpush.msra.mxu0 %v1853
    %2076 = vmatpush.msra.mxu0 %v1851
    %2077 = vmatmul.f32.gmra.mxu0 %v1811
    %v2078 = vpop.f32.mrf.mxu0
    %v2079 = vadd.f32 %v2056, %v2078
    %2080 = vmatmul.f32.gmra.mxu0 %v1815
    %v2081 = vpop.f32.mrf.mxu0
    %v2082 = vadd.f32 %v2059, %v2081
    %2083 = vdwg.mxu0
    %2084 = vmatpush.msra.mxu0 %v1913
    %2085 = vmatpush.msra.mxu0 %v1911
    %2086 = vmatpush.msra.mxu0 %v1909
    %2087 = vmatpush.msra.mxu0 %v1907
    %2088 = vmatpush.msra.mxu0 %v1905
    %2089 = vmatpush.msra.mxu0 %v1903
    %2090 = vmatpush.msra.mxu0 %v1901
    %2091 = vmatpush.msra.mxu0 %v1899
    %2092 = vmatpush.msra.mxu0 %v1897
    %2093 = vmatpush.msra.mxu0 %v1895
    %2094 = vmatpush.msra.mxu0 %v1893
    %2095 = vmatpush.msra.mxu0 %v1891
    %2096 = vmatpush.msra.mxu0 %v1889
    %2097 = vmatpush.msra.mxu0 %v1887
    %2098 = vmatpush.msra.mxu0 %v1885
    %2099 = vmatpush.msra.mxu0 %v1883
    %2100 = vmatmul.f32.gmra.mxu0 %v1812
    %v2101 = vpop.f32.mrf.mxu0
    %v2102 = vadd.f32 %v2079, %v2101
    %2103 = vmatmul.f32.gmra.mxu0 %v1816
    %v2104 = vpop.f32.mrf.mxu0
    %v2105 = vadd.f32 %v2082, %v2104
    %2106 = vdwg.mxu0
    %2107 = vmatpush.msra.mxu0 %v1945
    %2108 = vmatpush.msra.mxu0 %v1943
    %2109 = vmatpush.msra.mxu0 %v1941
    %2110 = vmatpush.msra.mxu0 %v1939
    %2111 = vmatpush.msra.mxu0 %v1937
    %2112 = vmatpush.msra.mxu0 %v1935
    %2113 = vmatpush.msra.mxu0 %v1933
    %2114 = vmatpush.msra.mxu0 %v1931
    %2115 = vmatpush.msra.mxu0 %v1929
    %2116 = vmatpush.msra.mxu0 %v1927
    %2117 = vmatpush.msra.mxu0 %v1925
    %2118 = vmatpush.msra.mxu0 %v1923
    %2119 = vmatpush.msra.mxu0 %v1921
    %2120 = vmatpush.msra.mxu0 %v1919
    %2121 = vmatpush.msra.mxu0 %v1917
    %2122 = vmatpush.msra.mxu0 %v1915
    %2123 = vmatmul.f32.gmra.mxu0 %v1813
    %v2124 = vpop.f32.mrf.mxu0
    %v2125 = vadd.f32 %v2102, %v2124
    %2126 = vmatmul.f32.gmra.mxu0 %v1817
    %v2127 = vpop.f32.mrf.mxu0
    %v2128 = vadd.f32 %v2105, %v2127
    %2129 = vdwg.mxu0
    %v2130 = vadd.f32 %v974, %v2033
    %v2131 = vadd.f32 %v975, %v2125
    %v2132 = vadd.f32 %v976, %v2036
    %v2133 = vadd.f32 %v977, %v2128
    %2134 = vst [vmem:[#allocation14] sm:$0xff] %v2130
    %2135 = vst [vmem:[#allocation14 + $0x8] sm:$0xff] %v2131
    %2136 = vst [vmem:[#allocation14 + $0x10] sm:$0xff] %v2132
    %2137 = vst [vmem:[#allocation14 + $0x18] sm:$0xff] %v2133
    // Predicated region
    $region58: #{tpu_custom_call.1} parent=1 // pred_check
      _
    $region59: #{tpu_custom_call.1} parent=1 // pred_check_branch
      %2139 = sbr.rel (0) target = $region61
    $region60: #{tpu_custom_call.1} parent=1 // pred_region
      %2141 = vsyncadd [#allocation7], 0
      %s2142 = sshll.u32 [#allocation14], 4
      %s2143 = int_to_ptr.vmem [resolvable:$true] %s2142
      %s2144 = sshll.u32 %s9, 4
      %s2145 = int_to_ptr.hbm [resolvable:$true] %s2144
      %2150 = dma.vmem_to_hbm [thread:$0]  %s2143, 512, %s2145, [#allocation7], 256, 256, 16
    $region61: #{tpu_custom_call.1} parent=1 // pred_fallthru
      _
    // Predicated region
    $region62: #{tpu_custom_call.1} parent=1 // pred_check
      _
    $region63: #{tpu_custom_call.1} parent=1 // pred_check_branch
      %2152 = sbr.rel (0) target = $region65
    $region64: #{tpu_custom_call.1} parent=1 // pred_region
      %2154 = dma.done [#allocation7], 512
    $region65: #{tpu_custom_call.1} parent=1 // pred_fallthru
      _
    %2155 = vsyncpa [#allocation6], 1
    %2156 = vsyncpa [#allocation9], 1
    %2157 = vsyncpa [#allocation12], 1
    %2158 = vsyncpa [#allocation7], 1

</llo_original>
